<compile_context>
chip_gen: v7x
topology: tpu7x:2x2x1
jax: 0.10.0
libtpu: 0.0.40
codegen_flags: <defaults>
</compile_context>

<pallas_src>
import numpy as np
import jax
import jax.numpy as jnp
from jax.experimental import pallas as pl
from jax.experimental.pallas import tpu as pltpu

BIG_AREA = 99999999.0
TILE = 512  # HW tile (lane axis); sweep 256/512/1024 — 512 keeps vregs unspilled.


# ---------------------------------------------------------------------------
# Pallas kernel: per HW-tile, loop over the (small, static) batch dim and
# compute FCOS targets over m gt boxes, writing a packed [8, T] slab per batch.
#
# meta_ref : [5, T]        rows = (x, y, stride, limit_low, limit_high)
# gt_ref   : [B, m_pad, 8] cols = (x0, y0, x1, y1, class_as_f32, 0, 0, 0)
# out_ref  : [B, 8, T]     rows = (cls_f32, cnt, l, t, r, b, 0, 0)
# ---------------------------------------------------------------------------
def _gen_targets_kernel(meta_ref, gt_ref, out_ref):
    x = meta_ref[0:1, :]         # [1, T]
    y = meta_ref[1:2, :]
    stride = meta_ref[2:3, :]
    lim_lo = meta_ref[3:4, :]
    lim_hi = meta_ref[4:5, :]
    radiu = stride * 1.5

    B = gt_ref.shape[0]
    m_pad = gt_ref.shape[1]
    T = x.shape[1]
    neg1 = jnp.float32(-1.0)

    # B is small & static; each iteration's [m_pad, T] temporaries die at the
    # store below, so a static Python loop keeps the live vreg set bounded.
    for b in range(B):
        g = gt_ref[b]            # [m_pad, 8]
        gx0 = g[:, 0:1]          # [m, 1]
        gy0 = g[:, 1:2]
        gx1 = g[:, 2:3]
        gy1 = g[:, 3:4]
        # class ids carried as f32 (exact for ids < 2^24 — always true here)
        cls_f = g[:, 4:5]

        # ltrb offsets: [m, T]
        l_off = x - gx0
        t_off = y - gy0
        r_off = gx1 - x
        b_off = gy1 - y

        areas = (l_off + r_off) * (t_off + b_off)
        off_min = jnp.minimum(jnp.minimum(l_off, t_off), jnp.minimum(r_off, b_off))
        off_max = jnp.maximum(jnp.maximum(l_off, t_off), jnp.maximum(r_off, b_off))

        cx = (gx0 + gx1) * 0.5
        cy = (gy0 + gy1) * 0.5
        c_off_max = jnp.maximum(jnp.maximum(x - cx, y - cy),
                                jnp.maximum(cx - x, cy - y))

        # single fused positive mask -> masked areas (keeps live set tight)
        mask_pos = ((off_min > 0.0)
                    & (off_max > lim_lo) & (off_max <= lim_hi)
                    & (c_off_max < radiu))
        areas_m = jnp.where(mask_pos, areas, BIG_AREA)

        # argmin over gt boxes (sublane axis), first occurrence wins
        min_area = jnp.min(areas_m, axis=0, keepdims=True)              # [1, T]
        rows = jax.lax.broadcasted_iota(jnp.int32, areas_m.shape, 0)    # [m, T]
        min_idx = jnp.min(jnp.where(areas_m == min_area, rows, m_pad),
                          axis=0, keepdims=True)                        # [1, T]
        onehot = rows == min_idx                                        # [m, T]

        def sel(v):  # gather-at-argmin via masked reduction
            return jnp.sum(jnp.where(onehot, v, 0.0), axis=0, keepdims=True)

        reg_l = sel(l_off)
        reg_t = sel(t_off)
        reg_r = sel(r_off)
        reg_b = sel(b_off)
        cls_sel = sel(cls_f)

        lr_min = jnp.minimum(reg_l, reg_r)
        lr_max = jnp.maximum(reg_l, reg_r)
        tb_min = jnp.minimum(reg_t, reg_b)
        tb_max = jnp.maximum(reg_t, reg_b)
        # reciprocal goes to the EUP slot; approx=False preserves 1e-5 tolerance
        cnt = jnp.sqrt((lr_min * tb_min)
                       * pl.reciprocal(lr_max * tb_max + 1e-10, approx=False))

        # any positive box at this location?  (min_area stays BIG_AREA iff none)
        pos = min_area < BIG_AREA                                       # [1, T]

        # direct row writes into the packed output slab (no concatenate)
        out_ref[b, 0:1, :] = jnp.where(pos, cls_sel, 0.0)
        out_ref[b, 1:2, :] = jnp.where(pos, cnt, neg1)
        out_ref[b, 2:3, :] = jnp.where(pos, reg_l, neg1)
        out_ref[b, 3:4, :] = jnp.where(pos, reg_t, neg1)
        out_ref[b, 4:5, :] = jnp.where(pos, reg_r, neg1)
        out_ref[b, 5:6, :] = jnp.where(pos, reg_b, neg1)
        out_ref[b, 6:8, :] = jnp.zeros((2, T), jnp.float32)  # keep slab defined


# ---------------------------------------------------------------------------
# Glue: coordinate grids, padding, pallas_call dispatch.
# ---------------------------------------------------------------------------
def _coords_for_level(h, w, stride):
    # Matches coords_fmap2orig (torch.meshgrid default 'ij' indexing).
    shifts_x = np.arange(0, w * stride, stride, dtype=np.float32)
    shifts_y = np.arange(0, h * stride, stride, dtype=np.float32)
    sy, sx = np.meshgrid(shifts_y, shifts_x, indexing="ij")
    x = sx.reshape(-1) + stride // 2
    y = sy.reshape(-1) + stride // 2
    return x, y


def gen_targets(level_shapes, gt_boxes, classes, strides, limit_range, tile=TILE):
    B, m, _ = gt_boxes.shape

    xs, ys, ss, los, his = [], [], [], [], []
    for (h, w), stride, lr in zip(level_shapes, strides, limit_range):
        x, y = _coords_for_level(h, w, stride)
        xs.append(x)
        ys.append(y)
        ss.append(np.full_like(x, float(stride)))
        los.append(np.full_like(x, float(lr[0])))
        his.append(np.full_like(x, float(lr[1])))
    x = np.concatenate(xs)
    y = np.concatenate(ys)
    s = np.concatenate(ss)
    lo = np.concatenate(los)
    hi = np.concatenate(his)

    hw_total = x.shape[0]
    hw_pad = max(tile, int(np.ceil(hw_total / tile)) * tile)

    def padv(v, fill=0.0):
        return np.pad(v, (0, hw_pad - hw_total), constant_values=fill)

    meta = np.stack([padv(x), padv(y), padv(s, 1.0), padv(lo), padv(hi)], axis=0)
    meta = jnp.asarray(meta, jnp.float32)                                 # [5, hw_pad]

    # pad m to a multiple of 8; dummy (all-zero) boxes can never be positive.
    # pack gt boxes + class id into one [B, m_pad, 8] array (single tiny input).
    m_pad = max(8, int(np.ceil(m / 8)) * 8)
    gt_aug = jnp.zeros((B, m_pad, 8), jnp.float32)
    gt_aug = gt_aug.at[:, :m, :4].set(gt_boxes.astype(jnp.float32))
    gt_aug = gt_aug.at[:, :m, 4].set(classes.astype(jnp.float32))

    nt = hw_pad // tile
    grid = (nt,)

    out_shape = jax.ShapeDtypeStruct((B, 8, hw_pad), jnp.float32)
    in_specs = [
        pl.BlockSpec((5, tile), lambda t: (0, t)),
        pl.BlockSpec((B, m_pad, 8), lambda t: (0, 0, 0)),
    ]
    out_specs = pl.BlockSpec((B, 8, tile), lambda t: (0, 0, t))

    packed = pl.pallas_call(
        _gen_targets_kernel,
        out_shape=out_shape,
        grid_spec=pltpu.PrefetchScalarGridSpec(
            num_scalar_prefetch=0,
            grid=grid,
            in_specs=in_specs,
            out_specs=out_specs),
        compiler_params=pltpu.CompilerParams(
            dimension_semantics=("parallel",)),
    )(meta, gt_aug)

    packed = jnp.transpose(packed[:, :, :hw_total], (0, 2, 1))   # [B, HW, 8]
    cls_t = packed[:, :, 0:1].astype(jnp.int32)                  # [B, HW, 1]
    cnt_t = packed[:, :, 1:2]                                    # [B, HW, 1]
    reg_t = packed[:, :, 2:6]                                    # [B, HW, 4]
    return cls_t, cnt_t, reg_t


def gen_targets_forward(inputs, strides, limit_range):
    """Mirrors GenTargets.forward. inputs = [[cls_logits, cnt_logits, reg_preds],
    gt_boxes, classes]; logits are lists of NCHW arrays (values unused, only
    their H/W shapes define the coordinate grid)."""
    cls_logits, _cnt_logits, _reg_preds = inputs[0]
    gt_boxes = inputs[1]
    classes = inputs[2]
    assert len(strides) == len(cls_logits) == len(limit_range)
    level_shapes = [(a.shape[2], a.shape[3]) for a in cls_logits]  # NCHW -> (H, W)
    return gen_targets(level_shapes, gt_boxes, classes, strides, limit_range)


# ---------------------------------------------------------------------------
# Pure-numpy reference (mirrors the PyTorch code) for correctness checking.
# ---------------------------------------------------------------------------
def gen_targets_ref(level_shapes, gt_boxes, classes, strides, limit_range):
    gt = np.asarray(gt_boxes, np.float32)
    cls_np = np.asarray(classes, np.int64)
    B, m, _ = gt.shape
    cls_all, cnt_all, reg_all = [], [], []
    for (h, w), stride, lr in zip(level_shapes, strides, limit_range):
        x, y = _coords_for_level(h, w, stride)
        hw = h * w
        l_off = x[None, :, None] - gt[..., 0][:, None, :]
        t_off = y[None, :, None] - gt[..., 1][:, None, :]
        r_off = gt[..., 2][:, None, :] - x[None, :, None]
        b_off = gt[..., 3][:, None, :] - y[None, :, None]
        ltrb = np.stack([l_off, t_off, r_off, b_off], -1)        # [B, hw, m, 4]
        areas = (ltrb[..., 0] + ltrb[..., 2]) * (ltrb[..., 1] + ltrb[..., 3])
        off_min = ltrb.min(-1)
        off_max = ltrb.max(-1)
        mask_in_gt = off_min > 0
        mask_in_level = (off_max > lr[0]) & (off_max <= lr[1])
        radiu = stride * 1.5
        cx = (gt[..., 0] + gt[..., 2]) / 2
        cy = (gt[..., 1] + gt[..., 3]) / 2
        c_l = x[None, :, None] - cx[:, None, :]
        c_t = y[None, :, None] - cy[:, None, :]
        c_r = cx[:, None, :] - x[None, :, None]
        c_b = cy[:, None, :] - y[None, :, None]
        c_off_max = np.stack([c_l, c_t, c_r, c_b], -1).max(-1)
        mask_center = c_off_max < radiu
        mask_pos = mask_in_gt & mask_in_level & mask_center
        areas = np.where(mask_pos, areas, BIG_AREA)
        idx = areas.argmin(-1)                                    # [B, hw]
        bi = np.arange(B)[:, None]
        ni = np.arange(hw)[None, :]
        reg = ltrb[bi, ni, idx]                                   # [B, hw, 4]
        clsv = np.broadcast_to(cls_np[:, None, :], areas.shape)[bi, ni, idx][..., None]
        lr_min = np.minimum(reg[..., 0], reg[..., 2])
        lr_max = np.maximum(reg[..., 0], reg[..., 2])
        tb_min = np.minimum(reg[..., 1], reg[..., 3])
        tb_max = np.maximum(reg[..., 1], reg[..., 3])
        cnt = np.sqrt(np.maximum(lr_min * tb_min / (lr_max * tb_max + 1e-10), 0.0))[..., None]
        mask2 = mask_pos.sum(-1) >= 1                             # [B, hw]
        clsv = np.where(mask2[..., None], clsv, 0)
        cnt = np.where(mask2[..., None], cnt, -1.0)
        reg = np.where(mask2[..., None], reg, -1.0)
        cls_all.append(clsv)
        cnt_all.append(cnt)
        reg_all.append(reg)
    return (np.concatenate(cls_all, 1), np.concatenate(cnt_all, 1),
            np.concatenate(reg_all, 1))


if __name__ == "__main__":
    key = jax.random.PRNGKey(0)
    B = 2
    class_num = 4
    m = 6
    strides = [8, 16, 32]
    limit_range = [[-1, 64], [64, 128], [128, 999999]]
    img = 64
    level_hw = [(img // s, img // s) for s in strides]  # (8,8), (4,4), (2,2)

    keys = jax.random.split(key, 6)
    cls_logits = [jax.random.normal(keys[0], (B, class_num, h, w), jnp.float32)
                  for (h, w) in level_hw]
    cnt_logits = [jax.random.normal(keys[1], (B, 1, h, w), jnp.float32)
                  for (h, w) in level_hw]
    reg_preds = [jax.random.normal(keys[2], (B, 4, h, w), jnp.float32)
                 for (h, w) in level_hw]

    x0y0 = jax.random.uniform(keys[3], (B, m, 2), minval=0.0, maxval=40.0)
    wh = jax.random.uniform(keys[4], (B, m, 2), minval=8.0, maxval=40.0)
    gt_boxes = jnp.concatenate([x0y0, x0y0 + wh], axis=-1)       # [B, m, 4]
    classes = jax.random.randint(keys[5], (B, m), 1, class_num + 1)  # [B, m]

    inputs = [[cls_logits, cnt_logits, reg_preds], gt_boxes, classes]
    cls_t, cnt_t, reg_t = gen_targets_forward(inputs, strides, limit_range)
    jax.block_until_ready((cls_t, cnt_t, reg_t))

    # correctness check against a pure-numpy reference of the PyTorch module
    level_shapes = [(a.shape[2], a.shape[3]) for a in cls_logits]
    ref_cls, ref_cnt, ref_reg = gen_targets_ref(
        level_shapes, np.asarray(gt_boxes), np.asarray(classes), strides, limit_range)
    np.testing.assert_array_equal(np.asarray(cls_t), ref_cls.astype(np.int32))
    np.testing.assert_allclose(np.asarray(cnt_t), ref_cnt, rtol=1e-5, atol=1e-5)
    np.testing.assert_allclose(np.asarray(reg_t), ref_reg, rtol=1e-5, atol=1e-4)

    print("KERNEL_OK")
</pallas_src>

<mosaic_0001>
module attributes {stable_mosaic.version = 11 : i64} {
  func.func @_gen_targets_kernel(%arg0: i32, %arg1: memref<5x512xf32, #tpu.memory_space<vmem>>, %arg2: memref<2x8x8xf32, #tpu.memory_space<vmem>>, %arg3: memref<2x8x512xf32, #tpu.memory_space<vmem>>) attributes {dimension_semantics = [#tpu.dimension_semantics<parallel>], iteration_bounds = array<i64: 1>, scalar_prefetch = 0 : i64, scratch_operands = 0 : i64, tpu.core_type = #tpu.core_type<tc>, window_params = [{transform_indices = @transform_0, window_bounds = array<i64: 5, 512>}, {pipeline_mode = #tpu.pipeline_mode<synchronous>, transform_indices = @transform_1, window_bounds = array<i64: 2, 8, 8>}, {transform_indices = @transform_2, window_bounds = array<i64: 2, 8, 512>}]} {
    %c0 = arith.constant 0 : index
    %c0_0 = arith.constant 0 : index
    %0 = vector.load %arg1[%c0, %c0_0] : memref<5x512xf32, #tpu.memory_space<vmem>>, vector<1x512xf32>
    %c1 = arith.constant 1 : index
    %c0_1 = arith.constant 0 : index
    %1 = vector.load %arg1[%c1, %c0_1] : memref<5x512xf32, #tpu.memory_space<vmem>>, vector<1x512xf32>
    %c2 = arith.constant 2 : index
    %c0_2 = arith.constant 0 : index
    %2 = vector.load %arg1[%c2, %c0_2] : memref<5x512xf32, #tpu.memory_space<vmem>>, vector<1x512xf32>
    %c3 = arith.constant 3 : index
    %c0_3 = arith.constant 0 : index
    %3 = vector.load %arg1[%c3, %c0_3] : memref<5x512xf32, #tpu.memory_space<vmem>>, vector<1x512xf32>
    %c4 = arith.constant 4 : index
    %c0_4 = arith.constant 0 : index
    %4 = vector.load %arg1[%c4, %c0_4] : memref<5x512xf32, #tpu.memory_space<vmem>>, vector<1x512xf32>
    %cst = arith.constant 1.500000e+00 : f32
    %5 = vector.broadcast %cst : f32 to vector<1x512xf32>
    %6 = arith.mulf %2, %5 : vector<1x512xf32>
    %c0_5 = arith.constant 0 : index
    %c0_6 = arith.constant 0 : index
    %c0_7 = arith.constant 0 : index
    %7 = vector.load %arg2[%c0_5, %c0_6, %c0_7] : memref<2x8x8xf32, #tpu.memory_space<vmem>>, vector<1x8x8xf32>
    %8 = vector.shape_cast %7 : vector<1x8x8xf32> to vector<8x8xf32>
    %9 = vector.extract_strided_slice %8 {offsets = [0, 0], sizes = [8, 1], strides = [1, 1]} : vector<8x8xf32> to vector<8x1xf32>
    %10 = vector.extract_strided_slice %8 {offsets = [0, 1], sizes = [8, 1], strides = [1, 1]} : vector<8x8xf32> to vector<8x1xf32>
    %11 = vector.extract_strided_slice %8 {offsets = [0, 2], sizes = [8, 1], strides = [1, 1]} : vector<8x8xf32> to vector<8x1xf32>
    %12 = vector.extract_strided_slice %8 {offsets = [0, 3], sizes = [8, 1], strides = [1, 1]} : vector<8x8xf32> to vector<8x1xf32>
    %13 = vector.extract_strided_slice %8 {offsets = [0, 4], sizes = [8, 1], strides = [1, 1]} : vector<8x8xf32> to vector<8x1xf32>
    %14 = vector.broadcast %0 : vector<1x512xf32> to vector<8x512xf32>
    %15 = vector.broadcast %9 : vector<8x1xf32> to vector<8x512xf32>
    %16 = arith.subf %14, %15 : vector<8x512xf32>
    %17 = vector.broadcast %1 : vector<1x512xf32> to vector<8x512xf32>
    %18 = vector.broadcast %10 : vector<8x1xf32> to vector<8x512xf32>
    %19 = arith.subf %17, %18 : vector<8x512xf32>
    %20 = vector.broadcast %11 : vector<8x1xf32> to vector<8x512xf32>
    %21 = vector.broadcast %0 : vector<1x512xf32> to vector<8x512xf32>
    %22 = arith.subf %20, %21 : vector<8x512xf32>
    %23 = vector.broadcast %12 : vector<8x1xf32> to vector<8x512xf32>
    %24 = vector.broadcast %1 : vector<1x512xf32> to vector<8x512xf32>
    %25 = arith.subf %23, %24 : vector<8x512xf32>
    %26 = arith.addf %16, %22 : vector<8x512xf32>
    %27 = arith.addf %19, %25 : vector<8x512xf32>
    %28 = arith.mulf %26, %27 : vector<8x512xf32>
    %29 = arith.minimumf %16, %19 : vector<8x512xf32>
    %30 = arith.minimumf %22, %25 : vector<8x512xf32>
    %31 = arith.minimumf %29, %30 : vector<8x512xf32>
    %32 = arith.maximumf %16, %19 : vector<8x512xf32>
    %33 = arith.maximumf %22, %25 : vector<8x512xf32>
    %34 = arith.maximumf %32, %33 : vector<8x512xf32>
    %35 = arith.addf %9, %11 : vector<8x1xf32>
    %cst_8 = arith.constant 5.000000e-01 : f32
    %36 = vector.broadcast %cst_8 : f32 to vector<8x1xf32>
    %37 = arith.mulf %35, %36 : vector<8x1xf32>
    %38 = arith.addf %10, %12 : vector<8x1xf32>
    %cst_9 = arith.constant 5.000000e-01 : f32
    %39 = vector.broadcast %cst_9 : f32 to vector<8x1xf32>
    %40 = arith.mulf %38, %39 : vector<8x1xf32>
    %41 = vector.broadcast %0 : vector<1x512xf32> to vector<8x512xf32>
    %42 = vector.broadcast %37 : vector<8x1xf32> to vector<8x512xf32>
    %43 = arith.subf %41, %42 : vector<8x512xf32>
    %44 = vector.broadcast %1 : vector<1x512xf32> to vector<8x512xf32>
    %45 = vector.broadcast %40 : vector<8x1xf32> to vector<8x512xf32>
    %46 = arith.subf %44, %45 : vector<8x512xf32>
    %47 = arith.maximumf %43, %46 : vector<8x512xf32>
    %48 = vector.broadcast %37 : vector<8x1xf32> to vector<8x512xf32>
    %49 = vector.broadcast %0 : vector<1x512xf32> to vector<8x512xf32>
    %50 = arith.subf %48, %49 : vector<8x512xf32>
    %51 = vector.broadcast %40 : vector<8x1xf32> to vector<8x512xf32>
    %52 = vector.broadcast %1 : vector<1x512xf32> to vector<8x512xf32>
    %53 = arith.subf %51, %52 : vector<8x512xf32>
    %54 = arith.maximumf %50, %53 : vector<8x512xf32>
    %55 = arith.maximumf %47, %54 : vector<8x512xf32>
    %cst_10 = arith.constant 0.000000e+00 : f32
    %56 = vector.broadcast %cst_10 : f32 to vector<8x512xf32>
    %57 = arith.cmpf ogt, %31, %56 : vector<8x512xf32>
    %58 = vector.broadcast %3 : vector<1x512xf32> to vector<8x512xf32>
    %59 = arith.cmpf ogt, %34, %58 : vector<8x512xf32>
    %60 = arith.andi %57, %59 : vector<8x512xi1>
    %61 = vector.broadcast %4 : vector<1x512xf32> to vector<8x512xf32>
    %62 = arith.cmpf ole, %34, %61 : vector<8x512xf32>
    %63 = arith.andi %60, %62 : vector<8x512xi1>
    %64 = vector.broadcast %6 : vector<1x512xf32> to vector<8x512xf32>
    %65 = arith.cmpf olt, %55, %64 : vector<8x512xf32>
    %66 = arith.andi %63, %65 : vector<8x512xi1>
    %cst_11 = arith.constant 1.000000e+08 : f32
    %67 = vector.broadcast %cst_11 : f32 to vector<8x512xf32>
    %68 = arith.select %66, %28, %67 : vector<8x512xi1>, vector<8x512xf32>
    %cst_12 = arith.constant dense<0x7F800000> : vector<512xf32>
    %69 = vector.multi_reduction <minimumf>, %68, %cst_12 [0] : vector<8x512xf32> to vector<512xf32>
    %70 = vector.shape_cast %69 : vector<512xf32> to vector<1x512xf32>
    %71 = tpu.iota {dimensions = array<i32: 0>} : vector<8x512xi32>
    %72 = vector.broadcast %70 : vector<1x512xf32> to vector<8x512xf32>
    %73 = arith.cmpf oeq, %68, %72 : vector<8x512xf32>
    %c8_i32 = arith.constant 8 : i32
    %74 = vector.broadcast %c8_i32 : i32 to vector<8x512xi32>
    %75 = arith.select %73, %71, %74 : vector<8x512xi1>, vector<8x512xi32>
    %cst_13 = arith.constant dense<2147483647> : vector<512xi32>
    %76 = vector.multi_reduction <minsi>, %75, %cst_13 [0] : vector<8x512xi32> to vector<512xi32>
    %77 = vector.shape_cast %76 : vector<512xi32> to vector<1x512xi32>
    %78 = vector.broadcast %77 : vector<1x512xi32> to vector<8x512xi32>
    %79 = arith.cmpi eq, %71, %78 : vector<8x512xi32>
    %cst_14 = arith.constant 0.000000e+00 : f32
    %80 = vector.broadcast %cst_14 : f32 to vector<8x512xf32>
    %81 = arith.select %79, %16, %80 : vector<8x512xi1>, vector<8x512xf32>
    %cst_15 = arith.constant dense<0.000000e+00> : vector<512xf32>
    %82 = vector.multi_reduction <add>, %81, %cst_15 [0] : vector<8x512xf32> to vector<512xf32>
    %83 = vector.shape_cast %82 : vector<512xf32> to vector<1x512xf32>
    %cst_16 = arith.constant 0.000000e+00 : f32
    %84 = vector.broadcast %cst_16 : f32 to vector<8x512xf32>
    %85 = arith.select %79, %19, %84 : vector<8x512xi1>, vector<8x512xf32>
    %cst_17 = arith.constant dense<0.000000e+00> : vector<512xf32>
    %86 = vector.multi_reduction <add>, %85, %cst_17 [0] : vector<8x512xf32> to vector<512xf32>
    %87 = vector.shape_cast %86 : vector<512xf32> to vector<1x512xf32>
    %cst_18 = arith.constant 0.000000e+00 : f32
    %88 = vector.broadcast %cst_18 : f32 to vector<8x512xf32>
    %89 = arith.select %79, %22, %88 : vector<8x512xi1>, vector<8x512xf32>
    %cst_19 = arith.constant dense<0.000000e+00> : vector<512xf32>
    %90 = vector.multi_reduction <add>, %89, %cst_19 [0] : vector<8x512xf32> to vector<512xf32>
    %91 = vector.shape_cast %90 : vector<512xf32> to vector<1x512xf32>
    %cst_20 = arith.constant 0.000000e+00 : f32
    %92 = vector.broadcast %cst_20 : f32 to vector<8x512xf32>
    %93 = arith.select %79, %25, %92 : vector<8x512xi1>, vector<8x512xf32>
    %cst_21 = arith.constant dense<0.000000e+00> : vector<512xf32>
    %94 = vector.multi_reduction <add>, %93, %cst_21 [0] : vector<8x512xf32> to vector<512xf32>
    %95 = vector.shape_cast %94 : vector<512xf32> to vector<1x512xf32>
    %cst_22 = arith.constant 0.000000e+00 : f32
    %96 = vector.shape_cast %13 : vector<8x1xf32> to vector<8x1xf32>
    %97 = vector.broadcast %96 : vector<8x1xf32> to vector<8x512xf32>
    %98 = vector.broadcast %cst_22 : f32 to vector<8x512xf32>
    %99 = arith.select %79, %97, %98 : vector<8x512xi1>, vector<8x512xf32>
    %cst_23 = arith.constant dense<0.000000e+00> : vector<512xf32>
    %100 = vector.multi_reduction <add>, %99, %cst_23 [0] : vector<8x512xf32> to vector<512xf32>
    %101 = vector.shape_cast %100 : vector<512xf32> to vector<1x512xf32>
    %102 = arith.minimumf %83, %91 : vector<1x512xf32>
    %103 = arith.maximumf %83, %91 : vector<1x512xf32>
    %104 = arith.minimumf %87, %95 : vector<1x512xf32>
    %105 = arith.maximumf %87, %95 : vector<1x512xf32>
    %106 = arith.mulf %102, %104 : vector<1x512xf32>
    %107 = arith.mulf %103, %105 : vector<1x512xf32>
    %cst_24 = arith.constant 1.000000e-10 : f32
    %108 = vector.broadcast %cst_24 : f32 to vector<1x512xf32>
    %109 = arith.addf %107, %108 : vector<1x512xf32>
    %110 = tpu.reciprocal %109 : vector<1x512xf32> -> vector<1x512xf32>
    %111 = arith.mulf %106, %110 : vector<1x512xf32>
    %112 = math.sqrt %111 : vector<1x512xf32>
    %cst_25 = arith.constant 1.000000e+08 : f32
    %113 = vector.broadcast %cst_25 : f32 to vector<1x512xf32>
    %114 = arith.cmpf olt, %70, %113 : vector<1x512xf32>
    %cst_26 = arith.constant 0.000000e+00 : f32
    %115 = vector.broadcast %cst_26 : f32 to vector<1x512xf32>
    %116 = arith.select %114, %101, %115 : vector<1x512xi1>, vector<1x512xf32>
    %c0_27 = arith.constant 0 : index
    %c0_28 = arith.constant 0 : index
    %c0_29 = arith.constant 0 : index
    %117 = vector.load %arg3[%c0_27, %c0_28, %c0_29] : memref<2x8x512xf32, #tpu.memory_space<vmem>>, vector<1x1x512xf32>
    %118 = vector.shape_cast %117 : vector<1x1x512xf32> to vector<1x512xf32>
    %119 = vector.shape_cast %116 : vector<1x512xf32> to vector<1x1x512xf32>
    tpu.vector_store %arg3[%c0_27, %c0_28, %c0_29], %119 {strides = array<i32>} : memref<2x8x512xf32, #tpu.memory_space<vmem>>, vector<1x1x512xf32>,
    %cst_30 = arith.constant -1.000000e+00 : f32
    %120 = vector.broadcast %cst_30 : f32 to vector<1x512xf32>
    %121 = arith.select %114, %112, %120 : vector<1x512xi1>, vector<1x512xf32>
    %c0_31 = arith.constant 0 : index
    %c1_32 = arith.constant 1 : index
    %c0_33 = arith.constant 0 : index
    %122 = vector.load %arg3[%c0_31, %c1_32, %c0_33] : memref<2x8x512xf32, #tpu.memory_space<vmem>>, vector<1x1x512xf32>
    %123 = vector.shape_cast %122 : vector<1x1x512xf32> to vector<1x512xf32>
    %124 = vector.shape_cast %121 : vector<1x512xf32> to vector<1x1x512xf32>
    tpu.vector_store %arg3[%c0_31, %c1_32, %c0_33], %124 {strides = array<i32>} : memref<2x8x512xf32, #tpu.memory_space<vmem>>, vector<1x1x512xf32>,
    %cst_34 = arith.constant -1.000000e+00 : f32
    %125 = vector.broadcast %cst_34 : f32 to vector<1x512xf32>
    %126 = arith.select %114, %83, %125 : vector<1x512xi1>, vector<1x512xf32>
    %c0_35 = arith.constant 0 : index
    %c2_36 = arith.constant 2 : index
    %c0_37 = arith.constant 0 : index
    %127 = vector.load %arg3[%c0_35, %c2_36, %c0_37] : memref<2x8x512xf32, #tpu.memory_space<vmem>>, vector<1x1x512xf32>
    %128 = vector.shape_cast %127 : vector<1x1x512xf32> to vector<1x512xf32>
    %129 = vector.shape_cast %126 : vector<1x512xf32> to vector<1x1x512xf32>
    tpu.vector_store %arg3[%c0_35, %c2_36, %c0_37], %129 {strides = array<i32>} : memref<2x8x512xf32, #tpu.memory_space<vmem>>, vector<1x1x512xf32>,
    %cst_38 = arith.constant -1.000000e+00 : f32
    %130 = vector.broadcast %cst_38 : f32 to vector<1x512xf32>
    %131 = arith.select %114, %87, %130 : vector<1x512xi1>, vector<1x512xf32>
    %c0_39 = arith.constant 0 : index
    %c3_40 = arith.constant 3 : index
    %c0_41 = arith.constant 0 : index
    %132 = vector.load %arg3[%c0_39, %c3_40, %c0_41] : memref<2x8x512xf32, #tpu.memory_space<vmem>>, vector<1x1x512xf32>
    %133 = vector.shape_cast %132 : vector<1x1x512xf32> to vector<1x512xf32>
    %134 = vector.shape_cast %131 : vector<1x512xf32> to vector<1x1x512xf32>
    tpu.vector_store %arg3[%c0_39, %c3_40, %c0_41], %134 {strides = array<i32>} : memref<2x8x512xf32, #tpu.memory_space<vmem>>, vector<1x1x512xf32>,
    %cst_42 = arith.constant -1.000000e+00 : f32
    %135 = vector.broadcast %cst_42 : f32 to vector<1x512xf32>
    %136 = arith.select %114, %91, %135 : vector<1x512xi1>, vector<1x512xf32>
    %c0_43 = arith.constant 0 : index
    %c4_44 = arith.constant 4 : index
    %c0_45 = arith.constant 0 : index
    %137 = vector.load %arg3[%c0_43, %c4_44, %c0_45] : memref<2x8x512xf32, #tpu.memory_space<vmem>>, vector<1x1x512xf32>
    %138 = vector.shape_cast %137 : vector<1x1x512xf32> to vector<1x512xf32>
    %139 = vector.shape_cast %136 : vector<1x512xf32> to vector<1x1x512xf32>
    tpu.vector_store %arg3[%c0_43, %c4_44, %c0_45], %139 {strides = array<i32>} : memref<2x8x512xf32, #tpu.memory_space<vmem>>, vector<1x1x512xf32>,
    %cst_46 = arith.constant -1.000000e+00 : f32
    %140 = vector.broadcast %cst_46 : f32 to vector<1x512xf32>
    %141 = arith.select %114, %95, %140 : vector<1x512xi1>, vector<1x512xf32>
    %c0_47 = arith.constant 0 : index
    %c5 = arith.constant 5 : index
    %c0_48 = arith.constant 0 : index
    %142 = vector.load %arg3[%c0_47, %c5, %c0_48] : memref<2x8x512xf32, #tpu.memory_space<vmem>>, vector<1x1x512xf32>
    %143 = vector.shape_cast %142 : vector<1x1x512xf32> to vector<1x512xf32>
    %144 = vector.shape_cast %141 : vector<1x512xf32> to vector<1x1x512xf32>
    tpu.vector_store %arg3[%c0_47, %c5, %c0_48], %144 {strides = array<i32>} : memref<2x8x512xf32, #tpu.memory_space<vmem>>, vector<1x1x512xf32>,
    %cst_49 = arith.constant 0.000000e+00 : f32
    %145 = vector.broadcast %cst_49 : f32 to vector<2x512xf32>
    %c0_50 = arith.constant 0 : index
    %c6 = arith.constant 6 : index
    %c0_51 = arith.constant 0 : index
    %146 = vector.load %arg3[%c0_50, %c6, %c0_51] : memref<2x8x512xf32, #tpu.memory_space<vmem>>, vector<1x2x512xf32>
    %147 = vector.shape_cast %146 : vector<1x2x512xf32> to vector<2x512xf32>
    %148 = vector.shape_cast %145 : vector<2x512xf32> to vector<1x2x512xf32>
    tpu.vector_store %arg3[%c0_50, %c6, %c0_51], %148 {strides = array<i32>} : memref<2x8x512xf32, #tpu.memory_space<vmem>>, vector<1x2x512xf32>,
    %c1_52 = arith.constant 1 : index
    %c0_53 = arith.constant 0 : index
    %c0_54 = arith.constant 0 : index
    %149 = vector.load %arg2[%c1_52, %c0_53, %c0_54] : memref<2x8x8xf32, #tpu.memory_space<vmem>>, vector<1x8x8xf32>
    %150 = vector.shape_cast %149 : vector<1x8x8xf32> to vector<8x8xf32>
    %151 = vector.extract_strided_slice %150 {offsets = [0, 0], sizes = [8, 1], strides = [1, 1]} : vector<8x8xf32> to vector<8x1xf32>
    %152 = vector.extract_strided_slice %150 {offsets = [0, 1], sizes = [8, 1], strides = [1, 1]} : vector<8x8xf32> to vector<8x1xf32>
    %153 = vector.extract_strided_slice %150 {offsets = [0, 2], sizes = [8, 1], strides = [1, 1]} : vector<8x8xf32> to vector<8x1xf32>
    %154 = vector.extract_strided_slice %150 {offsets = [0, 3], sizes = [8, 1], strides = [1, 1]} : vector<8x8xf32> to vector<8x1xf32>
    %155 = vector.extract_strided_slice %150 {offsets = [0, 4], sizes = [8, 1], strides = [1, 1]} : vector<8x8xf32> to vector<8x1xf32>
    %156 = vector.broadcast %0 : vector<1x512xf32> to vector<8x512xf32>
    %157 = vector.broadcast %151 : vector<8x1xf32> to vector<8x512xf32>
    %158 = arith.subf %156, %157 : vector<8x512xf32>
    %159 = vector.broadcast %1 : vector<1x512xf32> to vector<8x512xf32>
    %160 = vector.broadcast %152 : vector<8x1xf32> to vector<8x512xf32>
    %161 = arith.subf %159, %160 : vector<8x512xf32>
    %162 = vector.broadcast %153 : vector<8x1xf32> to vector<8x512xf32>
    %163 = vector.broadcast %0 : vector<1x512xf32> to vector<8x512xf32>
    %164 = arith.subf %162, %163 : vector<8x512xf32>
    %165 = vector.broadcast %154 : vector<8x1xf32> to vector<8x512xf32>
    %166 = vector.broadcast %1 : vector<1x512xf32> to vector<8x512xf32>
    %167 = arith.subf %165, %166 : vector<8x512xf32>
    %168 = arith.addf %158, %164 : vector<8x512xf32>
    %169 = arith.addf %161, %167 : vector<8x512xf32>
    %170 = arith.mulf %168, %169 : vector<8x512xf32>
    %171 = arith.minimumf %158, %161 : vector<8x512xf32>
    %172 = arith.minimumf %164, %167 : vector<8x512xf32>
    %173 = arith.minimumf %171, %172 : vector<8x512xf32>
    %174 = arith.maximumf %158, %161 : vector<8x512xf32>
    %175 = arith.maximumf %164, %167 : vector<8x512xf32>
    %176 = arith.maximumf %174, %175 : vector<8x512xf32>
    %177 = arith.addf %151, %153 : vector<8x1xf32>
    %cst_55 = arith.constant 5.000000e-01 : f32
    %178 = vector.broadcast %cst_55 : f32 to vector<8x1xf32>
    %179 = arith.mulf %177, %178 : vector<8x1xf32>
    %180 = arith.addf %152, %154 : vector<8x1xf32>
    %cst_56 = arith.constant 5.000000e-01 : f32
    %181 = vector.broadcast %cst_56 : f32 to vector<8x1xf32>
    %182 = arith.mulf %180, %181 : vector<8x1xf32>
    %183 = vector.broadcast %0 : vector<1x512xf32> to vector<8x512xf32>
    %184 = vector.broadcast %179 : vector<8x1xf32> to vector<8x512xf32>
    %185 = arith.subf %183, %184 : vector<8x512xf32>
    %186 = vector.broadcast %1 : vector<1x512xf32> to vector<8x512xf32>
    %187 = vector.broadcast %182 : vector<8x1xf32> to vector<8x512xf32>
    %188 = arith.subf %186, %187 : vector<8x512xf32>
    %189 = arith.maximumf %185, %188 : vector<8x512xf32>
    %190 = vector.broadcast %179 : vector<8x1xf32> to vector<8x512xf32>
    %191 = vector.broadcast %0 : vector<1x512xf32> to vector<8x512xf32>
    %192 = arith.subf %190, %191 : vector<8x512xf32>
    %193 = vector.broadcast %182 : vector<8x1xf32> to vector<8x512xf32>
    %194 = vector.broadcast %1 : vector<1x512xf32> to vector<8x512xf32>
    %195 = arith.subf %193, %194 : vector<8x512xf32>
    %196 = arith.maximumf %192, %195 : vector<8x512xf32>
    %197 = arith.maximumf %189, %196 : vector<8x512xf32>
    %cst_57 = arith.constant 0.000000e+00 : f32
    %198 = vector.broadcast %cst_57 : f32 to vector<8x512xf32>
    %199 = arith.cmpf ogt, %173, %198 : vector<8x512xf32>
    %200 = vector.broadcast %3 : vector<1x512xf32> to vector<8x512xf32>
    %201 = arith.cmpf ogt, %176, %200 : vector<8x512xf32>
    %202 = arith.andi %199, %201 : vector<8x512xi1>
    %203 = vector.broadcast %4 : vector<1x512xf32> to vector<8x512xf32>
    %204 = arith.cmpf ole, %176, %203 : vector<8x512xf32>
    %205 = arith.andi %202, %204 : vector<8x512xi1>
    %206 = vector.broadcast %6 : vector<1x512xf32> to vector<8x512xf32>
    %207 = arith.cmpf olt, %197, %206 : vector<8x512xf32>
    %208 = arith.andi %205, %207 : vector<8x512xi1>
    %cst_58 = arith.constant 1.000000e+08 : f32
    %209 = vector.broadcast %cst_58 : f32 to vector<8x512xf32>
    %210 = arith.select %208, %170, %209 : vector<8x512xi1>, vector<8x512xf32>
    %cst_59 = arith.constant dense<0x7F800000> : vector<512xf32>
    %211 = vector.multi_reduction <minimumf>, %210, %cst_59 [0] : vector<8x512xf32> to vector<512xf32>
    %212 = vector.shape_cast %211 : vector<512xf32> to vector<1x512xf32>
    %213 = tpu.iota {dimensions = array<i32: 0>} : vector<8x512xi32>
    %214 = vector.broadcast %212 : vector<1x512xf32> to vector<8x512xf32>
    %215 = arith.cmpf oeq, %210, %214 : vector<8x512xf32>
    %c8_i32_60 = arith.constant 8 : i32
    %216 = vector.broadcast %c8_i32_60 : i32 to vector<8x512xi32>
    %217 = arith.select %215, %213, %216 : vector<8x512xi1>, vector<8x512xi32>
    %cst_61 = arith.constant dense<2147483647> : vector<512xi32>
    %218 = vector.multi_reduction <minsi>, %217, %cst_61 [0] : vector<8x512xi32> to vector<512xi32>
    %219 = vector.shape_cast %218 : vector<512xi32> to vector<1x512xi32>
    %220 = vector.broadcast %219 : vector<1x512xi32> to vector<8x512xi32>
    %221 = arith.cmpi eq, %213, %220 : vector<8x512xi32>
    %cst_62 = arith.constant 0.000000e+00 : f32
    %222 = vector.broadcast %cst_62 : f32 to vector<8x512xf32>
    %223 = arith.select %221, %158, %222 : vector<8x512xi1>, vector<8x512xf32>
    %cst_63 = arith.constant dense<0.000000e+00> : vector<512xf32>
    %224 = vector.multi_reduction <add>, %223, %cst_63 [0] : vector<8x512xf32> to vector<512xf32>
    %225 = vector.shape_cast %224 : vector<512xf32> to vector<1x512xf32>
    %cst_64 = arith.constant 0.000000e+00 : f32
    %226 = vector.broadcast %cst_64 : f32 to vector<8x512xf32>
    %227 = arith.select %221, %161, %226 : vector<8x512xi1>, vector<8x512xf32>
    %cst_65 = arith.constant dense<0.000000e+00> : vector<512xf32>
    %228 = vector.multi_reduction <add>, %227, %cst_65 [0] : vector<8x512xf32> to vector<512xf32>
    %229 = vector.shape_cast %228 : vector<512xf32> to vector<1x512xf32>
    %cst_66 = arith.constant 0.000000e+00 : f32
    %230 = vector.broadcast %cst_66 : f32 to vector<8x512xf32>
    %231 = arith.select %221, %164, %230 : vector<8x512xi1>, vector<8x512xf32>
    %cst_67 = arith.constant dense<0.000000e+00> : vector<512xf32>
    %232 = vector.multi_reduction <add>, %231, %cst_67 [0] : vector<8x512xf32> to vector<512xf32>
    %233 = vector.shape_cast %232 : vector<512xf32> to vector<1x512xf32>
    %cst_68 = arith.constant 0.000000e+00 : f32
    %234 = vector.broadcast %cst_68 : f32 to vector<8x512xf32>
    %235 = arith.select %221, %167, %234 : vector<8x512xi1>, vector<8x512xf32>
    %cst_69 = arith.constant dense<0.000000e+00> : vector<512xf32>
    %236 = vector.multi_reduction <add>, %235, %cst_69 [0] : vector<8x512xf32> to vector<512xf32>
    %237 = vector.shape_cast %236 : vector<512xf32> to vector<1x512xf32>
    %cst_70 = arith.constant 0.000000e+00 : f32
    %238 = vector.shape_cast %155 : vector<8x1xf32> to vector<8x1xf32>
    %239 = vector.broadcast %238 : vector<8x1xf32> to vector<8x512xf32>
    %240 = vector.broadcast %cst_70 : f32 to vector<8x512xf32>
    %241 = arith.select %221, %239, %240 : vector<8x512xi1>, vector<8x512xf32>
    %cst_71 = arith.constant dense<0.000000e+00> : vector<512xf32>
    %242 = vector.multi_reduction <add>, %241, %cst_71 [0] : vector<8x512xf32> to vector<512xf32>
    %243 = vector.shape_cast %242 : vector<512xf32> to vector<1x512xf32>
    %244 = arith.minimumf %225, %233 : vector<1x512xf32>
    %245 = arith.maximumf %225, %233 : vector<1x512xf32>
    %246 = arith.minimumf %229, %237 : vector<1x512xf32>
    %247 = arith.maximumf %229, %237 : vector<1x512xf32>
    %248 = arith.mulf %244, %246 : vector<1x512xf32>
    %249 = arith.mulf %245, %247 : vector<1x512xf32>
    %cst_72 = arith.constant 1.000000e-10 : f32
    %250 = vector.broadcast %cst_72 : f32 to vector<1x512xf32>
    %251 = arith.addf %249, %250 : vector<1x512xf32>
    %252 = tpu.reciprocal %251 : vector<1x512xf32> -> vector<1x512xf32>
    %253 = arith.mulf %248, %252 : vector<1x512xf32>
    %254 = math.sqrt %253 : vector<1x512xf32>
    %cst_73 = arith.constant 1.000000e+08 : f32
    %255 = vector.broadcast %cst_73 : f32 to vector<1x512xf32>
    %256 = arith.cmpf olt, %212, %255 : vector<1x512xf32>
    %cst_74 = arith.constant 0.000000e+00 : f32
    %257 = vector.broadcast %cst_74 : f32 to vector<1x512xf32>
    %258 = arith.select %256, %243, %257 : vector<1x512xi1>, vector<1x512xf32>
    %c1_75 = arith.constant 1 : index
    %c0_76 = arith.constant 0 : index
    %c0_77 = arith.constant 0 : index
    %259 = vector.load %arg3[%c1_75, %c0_76, %c0_77] : memref<2x8x512xf32, #tpu.memory_space<vmem>>, vector<1x1x512xf32>
    %260 = vector.shape_cast %259 : vector<1x1x512xf32> to vector<1x512xf32>
    %261 = vector.shape_cast %258 : vector<1x512xf32> to vector<1x1x512xf32>
    tpu.vector_store %arg3[%c1_75, %c0_76, %c0_77], %261 {strides = array<i32>} : memref<2x8x512xf32, #tpu.memory_space<vmem>>, vector<1x1x512xf32>,
    %cst_78 = arith.constant -1.000000e+00 : f32
    %262 = vector.broadcast %cst_78 : f32 to vector<1x512xf32>
    %263 = arith.select %256, %254, %262 : vector<1x512xi1>, vector<1x512xf32>
    %c1_79 = arith.constant 1 : index
    %c1_80 = arith.constant 1 : index
    %c0_81 = arith.constant 0 : index
    %264 = vector.load %arg3[%c1_79, %c1_80, %c0_81] : memref<2x8x512xf32, #tpu.memory_space<vmem>>, vector<1x1x512xf32>
    %265 = vector.shape_cast %264 : vector<1x1x512xf32> to vector<1x512xf32>
    %266 = vector.shape_cast %263 : vector<1x512xf32> to vector<1x1x512xf32>
    tpu.vector_store %arg3[%c1_79, %c1_80, %c0_81], %266 {strides = array<i32>} : memref<2x8x512xf32, #tpu.memory_space<vmem>>, vector<1x1x512xf32>,
    %cst_82 = arith.constant -1.000000e+00 : f32
    %267 = vector.broadcast %cst_82 : f32 to vector<1x512xf32>
    %268 = arith.select %256, %225, %267 : vector<1x512xi1>, vector<1x512xf32>
    %c1_83 = arith.constant 1 : index
    %c2_84 = arith.constant 2 : index
    %c0_85 = arith.constant 0 : index
    %269 = vector.load %arg3[%c1_83, %c2_84, %c0_85] : memref<2x8x512xf32, #tpu.memory_space<vmem>>, vector<1x1x512xf32>
    %270 = vector.shape_cast %269 : vector<1x1x512xf32> to vector<1x512xf32>
    %271 = vector.shape_cast %268 : vector<1x512xf32> to vector<1x1x512xf32>
    tpu.vector_store %arg3[%c1_83, %c2_84, %c0_85], %271 {strides = array<i32>} : memref<2x8x512xf32, #tpu.memory_space<vmem>>, vector<1x1x512xf32>,
    %cst_86 = arith.constant -1.000000e+00 : f32
    %272 = vector.broadcast %cst_86 : f32 to vector<1x512xf32>
    %273 = arith.select %256, %229, %272 : vector<1x512xi1>, vector<1x512xf32>
    %c1_87 = arith.constant 1 : index
    %c3_88 = arith.constant 3 : index
    %c0_89 = arith.constant 0 : index
    %274 = vector.load %arg3[%c1_87, %c3_88, %c0_89] : memref<2x8x512xf32, #tpu.memory_space<vmem>>, vector<1x1x512xf32>
    %275 = vector.shape_cast %274 : vector<1x1x512xf32> to vector<1x512xf32>
    %276 = vector.shape_cast %273 : vector<1x512xf32> to vector<1x1x512xf32>
    tpu.vector_store %arg3[%c1_87, %c3_88, %c0_89], %276 {strides = array<i32>} : memref<2x8x512xf32, #tpu.memory_space<vmem>>, vector<1x1x512xf32>,
    %cst_90 = arith.constant -1.000000e+00 : f32
    %277 = vector.broadcast %cst_90 : f32 to vector<1x512xf32>
    %278 = arith.select %256, %233, %277 : vector<1x512xi1>, vector<1x512xf32>
    %c1_91 = arith.constant 1 : index
    %c4_92 = arith.constant 4 : index
    %c0_93 = arith.constant 0 : index
    %279 = vector.load %arg3[%c1_91, %c4_92, %c0_93] : memref<2x8x512xf32, #tpu.memory_space<vmem>>, vector<1x1x512xf32>
    %280 = vector.shape_cast %279 : vector<1x1x512xf32> to vector<1x512xf32>
    %281 = vector.shape_cast %278 : vector<1x512xf32> to vector<1x1x512xf32>
    tpu.vector_store %arg3[%c1_91, %c4_92, %c0_93], %281 {strides = array<i32>} : memref<2x8x512xf32, #tpu.memory_space<vmem>>, vector<1x1x512xf32>,
    %cst_94 = arith.constant -1.000000e+00 : f32
    %282 = vector.broadcast %cst_94 : f32 to vector<1x512xf32>
    %283 = arith.select %256, %237, %282 : vector<1x512xi1>, vector<1x512xf32>
    %c1_95 = arith.constant 1 : index
    %c5_96 = arith.constant 5 : index
    %c0_97 = arith.constant 0 : index
    %284 = vector.load %arg3[%c1_95, %c5_96, %c0_97] : memref<2x8x512xf32, #tpu.memory_space<vmem>>, vector<1x1x512xf32>
    %285 = vector.shape_cast %284 : vector<1x1x512xf32> to vector<1x512xf32>
    %286 = vector.shape_cast %283 : vector<1x512xf32> to vector<1x1x512xf32>
    tpu.vector_store %arg3[%c1_95, %c5_96, %c0_97], %286 {strides = array<i32>} : memref<2x8x512xf32, #tpu.memory_space<vmem>>, vector<1x1x512xf32>,
    %cst_98 = arith.constant 0.000000e+00 : f32
    %287 = vector.broadcast %cst_98 : f32 to vector<2x512xf32>
    %c1_99 = arith.constant 1 : index
    %c6_100 = arith.constant 6 : index
    %c0_101 = arith.constant 0 : index
    %288 = vector.load %arg3[%c1_99, %c6_100, %c0_101] : memref<2x8x512xf32, #tpu.memory_space<vmem>>, vector<1x2x512xf32>
    %289 = vector.shape_cast %288 : vector<1x2x512xf32> to vector<2x512xf32>
    %290 = vector.shape_cast %287 : vector<2x512xf32> to vector<1x2x512xf32>
    tpu.vector_store %arg3[%c1_99, %c6_100, %c0_101], %290 {strides = array<i32>} : memref<2x8x512xf32, #tpu.memory_space<vmem>>, vector<1x2x512xf32>,
    return
  }
  func.func @transform_0(%arg0: i32) -> (i32, i32) {
    %c0_i32 = arith.constant 0 : i32
    %c0_i32_0 = arith.constant 0 : i32
    return %c0_i32, %arg0 : i32, i32
  }
  func.func @transform_1(%arg0: i32) -> (i32, i32, i32) {
    %c0_i32 = arith.constant 0 : i32
    %c0_i32_0 = arith.constant 0 : i32
    %c0_i32_1 = arith.constant 0 : i32
    %c0_i32_2 = arith.constant 0 : i32
    return %c0_i32, %c0_i32_0, %c0_i32_1 : i32, i32, i32
  }
  func.func @transform_2(%arg0: i32) -> (i32, i32, i32) {
    %c0_i32 = arith.constant 0 : i32
    %c0_i32_0 = arith.constant 0 : i32
    %c0_i32_1 = arith.constant 0 : i32
    return %c0_i32, %c0_i32_0, %arg0 : i32, i32, i32
  }
}

</mosaic_0001>

<llo_original>
// kernel: tpu_custom_call.1
$region0: #{tpu_custom_call.1}
  #allocation0 [shape = 'u32[]', space=smem, size = 0x4, offset = 0x4, fixed_abs, tag = 'smem constant byte address 0x4 - core index']
  #allocation1 [shape = 'u32[144,128]{1,0:T(1,128)}', space=vmem, size = 0x12000, scoped, tag = 'internal scratch']
  %s0 = inlined_call_operand.hbm [shape: f32[5,512], index: 0, kind: input, shape index: {}]
  %s1 = inlined_call_operand.hbm [shape: f32[2,8,8], index: 1, kind: input, shape index: {}]
  %s2 = inlined_call_operand.hbm [shape: f32[2,8,512], index: 2, kind: output, shape index: {}]
  %s3 = sld [smem:[#allocation0]]
  $region26: #{tpu_custom_call.1} parent=0
    _
  %s5 = ssub.s32 1, %s3
  %s6 = scalar_select 0, %s5, %s3
  $region1: #{tpu_custom_call.1} parent=0
    #allocation2 [shape = 'u8[16384]{0}', space=vmem, size = 0x4000, scoped, tag = 'input window, operand 0, single buffered']
    #allocation3 [shape = 's32[1]{0}', space=sflag, size = 0x4, scoped, tag = 'scoped memory for tpu_custom_call.1']
    #allocation4 [shape = 's32[1]{0}', space=sflag, size = 0x4, scoped, tag = 'scoped memory for tpu_custom_call.1']
    #allocation5 [shape = 'u8[8192]{0}', space=vmem, size = 0x2000, scoped, tag = 'input window, operand 1, single buffered']
    #allocation6 [shape = 's32[1]{0}', space=sflag, size = 0x4, scoped, tag = 'scoped memory for tpu_custom_call.1']
    #allocation7 [shape = 'u8[32768]{0}', space=vmem, size = 0x8000, scoped, tag = 'output window, operand 0, single buffered']
    %7 = vsyncpa [#allocation3], 0
    %8 = vsyncpa [#allocation6], 0
    %9 = vsyncpa [#allocation4], 0
    // Predicated region
    $region2: #{tpu_custom_call.1} parent=1 // pred_check
      _
    $region3: #{tpu_custom_call.1} parent=1 // pred_check_branch
      %11 = sbr.rel (0) target = $region5
    $region4: #{tpu_custom_call.1} parent=1 // pred_region
      %s13 = ssub.s32 512, 512
      %14 = vsyncadd [#allocation3], %s13
      %s16 = sshll.u32 [#allocation2], 4
      %s17 = int_to_ptr.vmem [resolvable:$true] %s16
      %19 = dma.hbm_to_vmem [thread:$0]  %s0, 512, %s17, [#allocation3]
    $region5: #{tpu_custom_call.1} parent=1 // pred_fallthru
      _
    // Predicated region
    $region6: #{tpu_custom_call.1} parent=1 // pred_check
      _
    $region7: #{tpu_custom_call.1} parent=1 // pred_check_branch
      %21 = sbr.rel (0) target = $region9
    $region8: #{tpu_custom_call.1} parent=1 // pred_region
      %s23 = ssub.s32 256, 256
      %24 = vsyncadd [#allocation6], %s23
      %s25 = sshll.u32 [#allocation5], 4
      %s26 = int_to_ptr.vmem [resolvable:$true] %s25
      %31 = dma.hbm_to_vmem [thread:$0]  %s1, 256, %s26, [#allocation6], 128, 128, 8
    $region9: #{tpu_custom_call.1} parent=1 // pred_fallthru
      _
    // Predicated region
    $region10: #{tpu_custom_call.1} parent=1 // pred_check
      _
    $region11: #{tpu_custom_call.1} parent=1 // pred_check_branch
      %33 = sbr.rel (0) target = $region13
    $region12: #{tpu_custom_call.1} parent=1 // pred_region
      %34 = dma.done [#allocation3], 512
    $region13: #{tpu_custom_call.1} parent=1 // pred_fallthru
      _
    // Predicated region
    $region14: #{tpu_custom_call.1} parent=1 // pred_check
      _
    $region15: #{tpu_custom_call.1} parent=1 // pred_check_branch
      %36 = sbr.rel (0) target = $region17
    $region16: #{tpu_custom_call.1} parent=1 // pred_region
      %37 = dma.done [#allocation6], 256
    $region17: #{tpu_custom_call.1} parent=1 // pred_fallthru
      _
    %v38 = vld [vmem:[#allocation2] ss:$8 sm:$0xf]
    %s39 = scalar_lea.vmem [#allocation2], 1
    %v40 = vld [vmem:[%s39] ss:$8 sm:$0xf]
    %s41 = scalar_lea.vmem [#allocation2], 2
    %v42 = vld [vmem:[%s41] ss:$8 sm:$0xf]
    %s43 = scalar_lea.vmem [#allocation2], 3
    %v44 = vld [vmem:[%s43] ss:$8 sm:$0xf]
    %s45 = scalar_lea.vmem [#allocation2], 4
    %v46 = vld [vmem:[%s45] ss:$8 sm:$0xf]
    %v47 = vmul.f32 %v42, 1.5
    %v48 = vld [vmem:[#allocation5] sm:$0xff]
    %v50 = vlaneseq
    %v51 = vshrl.u32 %v50, 7
    %v52 = vsub.s32 0, %v51
    %v53 = vrot.slane %v38, %v52
    %v54 = vlaneseq
    %v55 = vshrl.u32 %v54, 7
    %v56 = vsub.s32 1, %v55
    %v57 = vrot.slane %v38, %v56
    %v58 = vlaneseq
    %v59 = vshrl.u32 %v58, 7
    %v60 = vsub.s32 2, %v59
    %v61 = vrot.slane %v38, %v60
    %v62 = vlaneseq
    %v63 = vshrl.u32 %v62, 7
    %v64 = vsub.s32 3, %v63
    %v65 = vrot.slane %v38, %v64
    %71 = vset.pattern.permute.xlu0 0
    %72 = vperm.xlu0 %71, %v48
    %v73 = vpop.permute.xlu0 %72
    %v75 = vsub.f32 %v53, %v73
    %v76 = vsub.f32 %v57, %v73
    %v77 = vsub.f32 %v61, %v73
    %v78 = vsub.f32 %v65, %v73
    %v80 = vlaneseq
    %v81 = vshrl.u32 %v80, 7
    %v82 = vsub.s32 0, %v81
    %v83 = vrot.slane %v40, %v82
    %v84 = vlaneseq
    %v85 = vshrl.u32 %v84, 7
    %v86 = vsub.s32 1, %v85
    %v87 = vrot.slane %v40, %v86
    %v88 = vlaneseq
    %v89 = vshrl.u32 %v88, 7
    %v90 = vsub.s32 2, %v89
    %v91 = vrot.slane %v40, %v90
    %v92 = vlaneseq
    %v93 = vshrl.u32 %v92, 7
    %v94 = vsub.s32 3, %v93
    %v95 = vrot.slane %v40, %v94
    %100 = vset.pattern.permute.xlu0 1
    %101 = vperm.xlu0 %100, %v48
    %v102 = vpop.permute.xlu0 %101
    %v104 = vsub.f32 %v83, %v102
    %v105 = vsub.f32 %v87, %v102
    %v106 = vsub.f32 %v91, %v102
    %v107 = vsub.f32 %v95, %v102
    %108 = vset.pattern.permute.xlu0 2
    %109 = vperm.xlu0 %108, %v48
    %v110 = vpop.permute.xlu0 %109
    %v112 = vsub.f32 %v110, %v53
    %v113 = vsub.f32 %v110, %v57
    %v114 = vsub.f32 %v110, %v61
    %v115 = vsub.f32 %v110, %v65
    %116 = vset.pattern.permute.xlu0 3
    %117 = vperm.xlu0 %116, %v48
    %v118 = vpop.permute.xlu0 %117
    %v120 = vsub.f32 %v118, %v83
    %v121 = vsub.f32 %v118, %v87
    %v122 = vsub.f32 %v118, %v91
    %v123 = vsub.f32 %v118, %v95
    %v124 = vadd.f32 %v75, %v112
    %v125 = vadd.f32 %v76, %v113
    %v126 = vadd.f32 %v77, %v114
    %v127 = vadd.f32 %v78, %v115
    %v128 = vadd.f32 %v104, %v120
    %v129 = vadd.f32 %v105, %v121
    %v130 = vadd.f32 %v106, %v122
    %v131 = vadd.f32 %v107, %v123
    %v132 = vmul.f32 %v124, %v128
    %v133 = vmul.f32 %v125, %v129
    %v134 = vmul.f32 %v126, %v130
    %v135 = vmul.f32 %v127, %v131
    %v136 = vmin.f32 %v75, %v104
    %v137 = vmin.f32 %v76, %v105
    %v138 = vmin.f32 %v77, %v106
    %v139 = vmin.f32 %v78, %v107
    %v140 = vmin.f32 %v112, %v120
    %v141 = vmin.f32 %v113, %v121
    %v142 = vmin.f32 %v114, %v122
    %v143 = vmin.f32 %v115, %v123
    %v144 = vmin.f32 %v136, %v140
    %v145 = vmin.f32 %v137, %v141
    %v146 = vmin.f32 %v138, %v142
    %v147 = vmin.f32 %v139, %v143
    %v148 = vmax.f32 %v75, %v104
    %v149 = vmax.f32 %v76, %v105
    %v150 = vmax.f32 %v77, %v106
    %v151 = vmax.f32 %v78, %v107
    %v152 = vmax.f32 %v112, %v120
    %v153 = vmax.f32 %v113, %v121
    %v154 = vmax.f32 %v114, %v122
    %v155 = vmax.f32 %v115, %v123
    %v156 = vmax.f32 %v148, %v152
    %v157 = vmax.f32 %v149, %v153
    %v158 = vmax.f32 %v150, %v154
    %v159 = vmax.f32 %v151, %v155
    %160 = vrot.lane.b32.xlu0 %v48, 126
    %v161 = vpop.permute.xlu0 %160
    %v163 = vadd.f32 %v48, %v161
    %v164 = vmul.f32 %v163, 0.5
    %166 = vset.pattern.permute.xlu0 0
    %167 = vperm.xlu0 %166, %v164
    %v168 = vpop.permute.xlu0 %167
    %v170 = vsub.f32 %v53, %v168
    %v171 = vsub.f32 %v57, %v168
    %v172 = vsub.f32 %v61, %v168
    %v173 = vsub.f32 %v65, %v168
    %174 = vset.pattern.permute.xlu0 1
    %175 = vperm.xlu0 %174, %v164
    %v176 = vpop.permute.xlu0 %175
    %v178 = vsub.f32 %v83, %v176
    %v179 = vsub.f32 %v87, %v176
    %v180 = vsub.f32 %v91, %v176
    %v181 = vsub.f32 %v95, %v176
    %v182 = vmax.f32 %v170, %v178
    %v183 = vmax.f32 %v171, %v179
    %v184 = vmax.f32 %v172, %v180
    %v185 = vmax.f32 %v173, %v181
    %v186 = vsub.f32 %v168, %v53
    %v187 = vsub.f32 %v168, %v57
    %v188 = vsub.f32 %v168, %v61
    %v189 = vsub.f32 %v168, %v65
    %v190 = vsub.f32 %v176, %v83
    %v191 = vsub.f32 %v176, %v87
    %v192 = vsub.f32 %v176, %v91
    %v193 = vsub.f32 %v176, %v95
    %v194 = vmax.f32 %v186, %v190
    %v195 = vmax.f32 %v187, %v191
    %v196 = vmax.f32 %v188, %v192
    %v197 = vmax.f32 %v189, %v193
    %v198 = vmax.f32 %v182, %v194
    %v199 = vmax.f32 %v183, %v195
    %v200 = vmax.f32 %v184, %v196
    %v201 = vmax.f32 %v185, %v197
    %vm202 = vcmp.gt.f32.partialorder %v144, 0.0
    %vm203 = vcmp.gt.f32.partialorder %v145, 0.0
    %vm204 = vcmp.gt.f32.partialorder %v146, 0.0
    %vm205 = vcmp.gt.f32.partialorder %v147, 0.0
    %v207 = vlaneseq
    %v208 = vshrl.u32 %v207, 7
    %v209 = vsub.s32 0, %v208
    %v210 = vrot.slane %v44, %v209
    %v211 = vlaneseq
    %v212 = vshrl.u32 %v211, 7
    %v213 = vsub.s32 1, %v212
    %v214 = vrot.slane %v44, %v213
    %v215 = vlaneseq
    %v216 = vshrl.u32 %v215, 7
    %v217 = vsub.s32 2, %v216
    %v218 = vrot.slane %v44, %v217
    %v219 = vlaneseq
    %v220 = vshrl.u32 %v219, 7
    %v221 = vsub.s32 3, %v220
    %v222 = vrot.slane %v44, %v221
    %vm227 = vcmp.gt.f32.partialorder %v156, %v210
    %vm228 = vcmp.gt.f32.partialorder %v157, %v214
    %vm229 = vcmp.gt.f32.partialorder %v158, %v218
    %vm230 = vcmp.gt.f32.partialorder %v159, %v222
    %vm231 = vmand %vm202, %vm227
    %vm232 = vmand %vm203, %vm228
    %vm233 = vmand %vm204, %vm229
    %vm234 = vmand %vm205, %vm230
    %v236 = vlaneseq
    %v237 = vshrl.u32 %v236, 7
    %v238 = vsub.s32 0, %v237
    %v239 = vrot.slane %v46, %v238
    %v240 = vlaneseq
    %v241 = vshrl.u32 %v240, 7
    %v242 = vsub.s32 1, %v241
    %v243 = vrot.slane %v46, %v242
    %v244 = vlaneseq
    %v245 = vshrl.u32 %v244, 7
    %v246 = vsub.s32 2, %v245
    %v247 = vrot.slane %v46, %v246
    %v248 = vlaneseq
    %v249 = vshrl.u32 %v248, 7
    %v250 = vsub.s32 3, %v249
    %v251 = vrot.slane %v46, %v250
    %vm256 = vcmp.le.f32.partialorder %v156, %v239
    %vm257 = vcmp.le.f32.partialorder %v157, %v243
    %vm258 = vcmp.le.f32.partialorder %v158, %v247
    %vm259 = vcmp.le.f32.partialorder %v159, %v251
    %vm260 = vmand %vm231, %vm256
    %vm261 = vmand %vm232, %vm257
    %vm262 = vmand %vm233, %vm258
    %vm263 = vmand %vm234, %vm259
    %v265 = vlaneseq
    %v266 = vshrl.u32 %v265, 7
    %v267 = vsub.s32 0, %v266
    %v268 = vrot.slane %v47, %v267
    %v269 = vlaneseq
    %v270 = vshrl.u32 %v269, 7
    %v271 = vsub.s32 1, %v270
    %v272 = vrot.slane %v47, %v271
    %v273 = vlaneseq
    %v274 = vshrl.u32 %v273, 7
    %v275 = vsub.s32 2, %v274
    %v276 = vrot.slane %v47, %v275
    %v277 = vlaneseq
    %v278 = vshrl.u32 %v277, 7
    %v279 = vsub.s32 3, %v278
    %v280 = vrot.slane %v47, %v279
    %vm285 = vcmp.lt.f32.partialorder %v198, %v268
    %vm286 = vcmp.lt.f32.partialorder %v199, %v272
    %vm287 = vcmp.lt.f32.partialorder %v200, %v276
    %vm288 = vcmp.lt.f32.partialorder %v201, %v280
    %vm289 = vmand %vm260, %vm285
    %vm290 = vmand %vm261, %vm286
    %vm291 = vmand %vm262, %vm287
    %vm292 = vmand %vm263, %vm288
    %v293 = vsel %vm289, %v132, 1e+08
    %v294 = vsel %vm290, %v133, 1e+08
    %v295 = vsel %vm291, %v134, 1e+08
    %v296 = vsel %vm292, %v135, 1e+08
    %v297 = vrot.slane %v293, 4
    %v298 = vmin.f32 %v293, %v297
    %v299 = vrot.slane %v298, 2
    %v300 = vmin.f32 %v298, %v299
    %v301 = vrot.slane %v300, 1
    %v302 = vmin.f32 %v300, %v301
    %v303 = vrot.slane %v294, 4
    %v304 = vmin.f32 %v294, %v303
    %v305 = vrot.slane %v304, 2
    %v306 = vmin.f32 %v304, %v305
    %v307 = vrot.slane %v306, 1
    %v308 = vmin.f32 %v306, %v307
    %v309 = vrot.slane %v295, 4
    %v310 = vmin.f32 %v295, %v309
    %v311 = vrot.slane %v310, 2
    %v312 = vmin.f32 %v310, %v311
    %v313 = vrot.slane %v312, 1
    %v314 = vmin.f32 %v312, %v313
    %v315 = vrot.slane %v296, 4
    %v316 = vmin.f32 %v296, %v315
    %v317 = vrot.slane %v316, 2
    %v318 = vmin.f32 %v316, %v317
    %v319 = vrot.slane %v318, 1
    %v320 = vmin.f32 %v318, %v319
    %v321 = vlaneseq
    %v322 = vshrl.u32 %v321, 7
    %vm323 = vcmp.eq.f32.partialorder %v293, %v302
    %vm324 = vcmp.eq.f32.partialorder %v294, %v308
    %vm325 = vcmp.eq.f32.partialorder %v295, %v314
    %vm326 = vcmp.eq.f32.partialorder %v296, %v320
    %v327 = vsel %vm323, %v322, 8
    %v328 = vsel %vm324, %v322, 8
    %v329 = vsel %vm325, %v322, 8
    %v330 = vsel %vm326, %v322, 8
    %v331 = vrot.slane %v327, 4
    %vm332 = vcmp.lt.s32.totalorder %v327, %v331
    %v333 = vsel %vm332, %v327, %v331
    %v334 = vrot.slane %v333, 2
    %vm335 = vcmp.lt.s32.totalorder %v333, %v334
    %v336 = vsel %vm335, %v333, %v334
    %v337 = vrot.slane %v336, 1
    %vm338 = vcmp.lt.s32.totalorder %v336, %v337
    %v339 = vsel %vm338, %v336, %v337
    %v340 = vrot.slane %v328, 4
    %vm341 = vcmp.lt.s32.totalorder %v328, %v340
    %v342 = vsel %vm341, %v328, %v340
    %v343 = vrot.slane %v342, 2
    %vm344 = vcmp.lt.s32.totalorder %v342, %v343
    %v345 = vsel %vm344, %v342, %v343
    %v346 = vrot.slane %v345, 1
    %vm347 = vcmp.lt.s32.totalorder %v345, %v346
    %v348 = vsel %vm347, %v345, %v346
    %v349 = vrot.slane %v329, 4
    %vm350 = vcmp.lt.s32.totalorder %v329, %v349
    %v351 = vsel %vm350, %v329, %v349
    %v352 = vrot.slane %v351, 2
    %vm353 = vcmp.lt.s32.totalorder %v351, %v352
    %v354 = vsel %vm353, %v351, %v352
    %v355 = vrot.slane %v354, 1
    %vm356 = vcmp.lt.s32.totalorder %v354, %v355
    %v357 = vsel %vm356, %v354, %v355
    %v358 = vrot.slane %v330, 4
    %vm359 = vcmp.lt.s32.totalorder %v330, %v358
    %v360 = vsel %vm359, %v330, %v358
    %v361 = vrot.slane %v360, 2
    %vm362 = vcmp.lt.s32.totalorder %v360, %v361
    %v363 = vsel %vm362, %v360, %v361
    %v364 = vrot.slane %v363, 1
    %vm365 = vcmp.lt.s32.totalorder %v363, %v364
    %v366 = vsel %vm365, %v363, %v364
    %vm367 = vcmp.eq.s32.totalorder %v322, %v339
    %vm368 = vcmp.eq.s32.totalorder %v322, %v348
    %vm369 = vcmp.eq.s32.totalorder %v322, %v357
    %vm370 = vcmp.eq.s32.totalorder %v322, %v366
    %v371 = vsel %vm367, %v75, 0.0
    %v372 = vsel %vm368, %v76, 0.0
    %v373 = vsel %vm369, %v77, 0.0
    %v374 = vsel %vm370, %v78, 0.0
    %v375 = vrot.slane %v371, 4
    %v376 = vadd.f32 %v371, %v375
    %v377 = vrot.slane %v376, 2
    %v378 = vadd.f32 %v376, %v377
    %v379 = vrot.slane %v378, 1
    %v380 = vadd.f32 %v378, %v379
    %v381 = vrot.slane %v372, 4
    %v382 = vadd.f32 %v372, %v381
    %v383 = vrot.slane %v382, 2
    %v384 = vadd.f32 %v382, %v383
    %v385 = vrot.slane %v384, 1
    %v386 = vadd.f32 %v384, %v385
    %v387 = vrot.slane %v373, 4
    %v388 = vadd.f32 %v373, %v387
    %v389 = vrot.slane %v388, 2
    %v390 = vadd.f32 %v388, %v389
    %v391 = vrot.slane %v390, 1
    %v392 = vadd.f32 %v390, %v391
    %v393 = vrot.slane %v374, 4
    %v394 = vadd.f32 %v374, %v393
    %v395 = vrot.slane %v394, 2
    %v396 = vadd.f32 %v394, %v395
    %v397 = vrot.slane %v396, 1
    %v398 = vadd.f32 %v396, %v397
    %v399 = vsel %vm367, %v104, 0.0
    %v400 = vsel %vm368, %v105, 0.0
    %v401 = vsel %vm369, %v106, 0.0
    %v402 = vsel %vm370, %v107, 0.0
    %v403 = vrot.slane %v399, 4
    %v404 = vadd.f32 %v399, %v403
    %v405 = vrot.slane %v404, 2
    %v406 = vadd.f32 %v404, %v405
    %v407 = vrot.slane %v406, 1
    %v408 = vadd.f32 %v406, %v407
    %v409 = vrot.slane %v400, 4
    %v410 = vadd.f32 %v400, %v409
    %v411 = vrot.slane %v410, 2
    %v412 = vadd.f32 %v410, %v411
    %v413 = vrot.slane %v412, 1
    %v414 = vadd.f32 %v412, %v413
    %v415 = vrot.slane %v401, 4
    %v416 = vadd.f32 %v401, %v415
    %v417 = vrot.slane %v416, 2
    %v418 = vadd.f32 %v416, %v417
    %v419 = vrot.slane %v418, 1
    %v420 = vadd.f32 %v418, %v419
    %v421 = vrot.slane %v402, 4
    %v422 = vadd.f32 %v402, %v421
    %v423 = vrot.slane %v422, 2
    %v424 = vadd.f32 %v422, %v423
    %v425 = vrot.slane %v424, 1
    %v426 = vadd.f32 %v424, %v425
    %v427 = vsel %vm367, %v112, 0.0
    %v428 = vsel %vm368, %v113, 0.0
    %v429 = vsel %vm369, %v114, 0.0
    %v430 = vsel %vm370, %v115, 0.0
    %v431 = vrot.slane %v427, 4
    %v432 = vadd.f32 %v427, %v431
    %v433 = vrot.slane %v432, 2
    %v434 = vadd.f32 %v432, %v433
    %v435 = vrot.slane %v434, 1
    %v436 = vadd.f32 %v434, %v435
    %v437 = vrot.slane %v428, 4
    %v438 = vadd.f32 %v428, %v437
    %v439 = vrot.slane %v438, 2
    %v440 = vadd.f32 %v438, %v439
    %v441 = vrot.slane %v440, 1
    %v442 = vadd.f32 %v440, %v441
    %v443 = vrot.slane %v429, 4
    %v444 = vadd.f32 %v429, %v443
    %v445 = vrot.slane %v444, 2
    %v446 = vadd.f32 %v444, %v445
    %v447 = vrot.slane %v446, 1
    %v448 = vadd.f32 %v446, %v447
    %v449 = vrot.slane %v430, 4
    %v450 = vadd.f32 %v430, %v449
    %v451 = vrot.slane %v450, 2
    %v452 = vadd.f32 %v450, %v451
    %v453 = vrot.slane %v452, 1
    %v454 = vadd.f32 %v452, %v453
    %v455 = vsel %vm367, %v120, 0.0
    %v456 = vsel %vm368, %v121, 0.0
    %v457 = vsel %vm369, %v122, 0.0
    %v458 = vsel %vm370, %v123, 0.0
    %v459 = vrot.slane %v455, 4
    %v460 = vadd.f32 %v455, %v459
    %v461 = vrot.slane %v460, 2
    %v462 = vadd.f32 %v460, %v461
    %v463 = vrot.slane %v462, 1
    %v464 = vadd.f32 %v462, %v463
    %v465 = vrot.slane %v456, 4
    %v466 = vadd.f32 %v456, %v465
    %v467 = vrot.slane %v466, 2
    %v468 = vadd.f32 %v466, %v467
    %v469 = vrot.slane %v468, 1
    %v470 = vadd.f32 %v468, %v469
    %v471 = vrot.slane %v457, 4
    %v472 = vadd.f32 %v457, %v471
    %v473 = vrot.slane %v472, 2
    %v474 = vadd.f32 %v472, %v473
    %v475 = vrot.slane %v474, 1
    %v476 = vadd.f32 %v474, %v475
    %v477 = vrot.slane %v458, 4
    %v478 = vadd.f32 %v458, %v477
    %v479 = vrot.slane %v478, 2
    %v480 = vadd.f32 %v478, %v479
    %v481 = vrot.slane %v480, 1
    %v482 = vadd.f32 %v480, %v481
    %483 = vset.pattern.permute.xlu0 4
    %484 = vperm.xlu0 %483, %v48
    %v485 = vpop.permute.xlu0 %484
    %v487 = vsel %vm367, %v485, 0.0
    %v488 = vsel %vm368, %v485, 0.0
    %v489 = vsel %vm369, %v485, 0.0
    %v490 = vsel %vm370, %v485, 0.0
    %v491 = vrot.slane %v487, 4
    %v492 = vadd.f32 %v487, %v491
    %v493 = vrot.slane %v492, 2
    %v494 = vadd.f32 %v492, %v493
    %v495 = vrot.slane %v494, 1
    %v496 = vadd.f32 %v494, %v495
    %v497 = vrot.slane %v488, 4
    %v498 = vadd.f32 %v488, %v497
    %v499 = vrot.slane %v498, 2
    %v500 = vadd.f32 %v498, %v499
    %v501 = vrot.slane %v500, 1
    %v502 = vadd.f32 %v500, %v501
    %v503 = vrot.slane %v489, 4
    %v504 = vadd.f32 %v489, %v503
    %v505 = vrot.slane %v504, 2
    %v506 = vadd.f32 %v504, %v505
    %v507 = vrot.slane %v506, 1
    %v508 = vadd.f32 %v506, %v507
    %v509 = vrot.slane %v490, 4
    %v510 = vadd.f32 %v490, %v509
    %v511 = vrot.slane %v510, 2
    %v512 = vadd.f32 %v510, %v511
    %v513 = vrot.slane %v512, 1
    %v514 = vadd.f32 %v512, %v513
    %v515 = vmin.f32 %v380, %v436
    %v516 = vmin.f32 %v386, %v442
    %v517 = vmin.f32 %v392, %v448
    %v518 = vmin.f32 %v398, %v454
    %v519 = vmax.f32 %v380, %v436
    %v520 = vmax.f32 %v386, %v442
    %v521 = vmax.f32 %v392, %v448
    %v522 = vmax.f32 %v398, %v454
    %v523 = vmin.f32 %v408, %v464
    %v524 = vmin.f32 %v414, %v470
    %v525 = vmin.f32 %v420, %v476
    %v526 = vmin.f32 %v426, %v482
    %v527 = vmax.f32 %v408, %v464
    %v528 = vmax.f32 %v414, %v470
    %v529 = vmax.f32 %v420, %v476
    %v530 = vmax.f32 %v426, %v482
    %v531 = vmul.f32 %v515, %v523
    %v532 = vmul.f32 %v516, %v524
    %v533 = vmul.f32 %v517, %v525
    %v534 = vmul.f32 %v518, %v526
    %v535 = vmul.f32 %v519, %v527
    %v536 = vmul.f32 %v520, %v528
    %v537 = vmul.f32 %v521, %v529
    %v538 = vmul.f32 %v522, %v530
    %v539 = vadd.f32 %v535, 1e-10
    %v540 = vadd.f32 %v536, 1e-10
    %v541 = vadd.f32 %v537, 1e-10
    %v542 = vadd.f32 %v538, 1e-10
    %v543 = vrcp.pop %v539
    %v544 = vrcp.pop %v540
    %v545 = vrcp.pop %v541
    %v546 = vrcp.pop %v542
    %v547 = vmul.f32 %v531, %v543
    %v548 = vmul.f32 %v532, %v544
    %v549 = vmul.f32 %v533, %v545
    %v550 = vmul.f32 %v534, %v546
    %v551 = vrsqrt.pop %v547
    %v552 = vmul.f32 %v547, %v551
    %vm553 = vcmp.eq.f32.partialorder %v547, inf
    %v554 = vsel %vm553, %v547, %v552
    %vm555 = vcmp.eq.f32.partialorder %v547, 0.0
    %v556 = vand.u32 %v547, 2147483648
    %v557 = vsel %vm555, %v556, %v554
    %v558 = vrsqrt.pop %v548
    %v559 = vmul.f32 %v548, %v558
    %vm560 = vcmp.eq.f32.partialorder %v548, inf
    %v561 = vsel %vm560, %v548, %v559
    %vm562 = vcmp.eq.f32.partialorder %v548, 0.0
    %v563 = vand.u32 %v548, 2147483648
    %v564 = vsel %vm562, %v563, %v561
    %v565 = vrsqrt.pop %v549
    %v566 = vmul.f32 %v549, %v565
    %vm567 = vcmp.eq.f32.partialorder %v549, inf
    %v568 = vsel %vm567, %v549, %v566
    %vm569 = vcmp.eq.f32.partialorder %v549, 0.0
    %v570 = vand.u32 %v549, 2147483648
    %v571 = vsel %vm569, %v570, %v568
    %v572 = vrsqrt.pop %v550
    %v573 = vmul.f32 %v550, %v572
    %vm574 = vcmp.eq.f32.partialorder %v550, inf
    %v575 = vsel %vm574, %v550, %v573
    %vm576 = vcmp.eq.f32.partialorder %v550, 0.0
    %v577 = vand.u32 %v550, 2147483648
    %v578 = vsel %vm576, %v577, %v575
    %vm579 = vcmp.lt.f32.partialorder %v302, 1e+08
    %vm580 = vcmp.lt.f32.partialorder %v308, 1e+08
    %vm581 = vcmp.lt.f32.partialorder %v314, 1e+08
    %vm582 = vcmp.lt.f32.partialorder %v320, 1e+08
    %v583 = vsel %vm579, %v496, 0.0
    %v584 = vsel %vm580, %v502, 0.0
    %v585 = vsel %vm581, %v508, 0.0
    %v586 = vsel %vm582, %v514, 0.0
    %v591 = vcombine.low %v583, %v584
    %v592 = vcombine.low %v585, %v586
    %v594 = vunpack.c.l.s4 1966171168
    %v595 = vunpack.c.0.s8 %v594
    %v596 = vlaneseq
    %v597 = vshrl.u32 %v596, 7
    %v598 = vsub.s32 %v595, %v597
    %v599 = vrot.slane %v591, %v598
    %v601 = vunpack.c.l.s4 1966171168
    %v602 = vunpack.c.0.s8 %v601
    %v603 = vlaneseq
    %v604 = vshrl.u32 %v603, 7
    %v605 = vsub.s32 %v602, %v604
    %v606 = vrot.slane %v592, %v605
    %v607 = vcombine.low %v599, %v606
    %v609 = vunpack.c.l.s4 1966171168
    %v610 = vunpack.c.0.s8 %v609
    %v611 = vlaneseq
    %v612 = vshrl.u32 %v611, 7
    %v613 = vsub.s32 %v610, %v612
    %v614 = vrot.slane %v607, %v613
    %v616 = vlaneseq
    %vm617 = vcmp.ge.s32.totalorder %v616, 0
    %vm618 = vcmp.lt.s32.totalorder %v616, 512
    %vm619 = vmand %vm617, %vm618
    %620 = vst.msk [vmem:[#allocation7] ss:$8 sm:$0xf] %vm619, %v614
    %621 = vst.msk [vmem:[#allocation7] ss:$8 sm:$0x0] %vm619, %v614
    %v622 = vsel %vm579, %v557, -1.0
    %v623 = vsel %vm580, %v564, -1.0
    %v624 = vsel %vm581, %v571, -1.0
    %v625 = vsel %vm582, %v578, -1.0
    %v630 = vcombine.low %v622, %v623
    %v631 = vcombine.low %v624, %v625
    %v633 = vunpack.c.l.s4 1966171168
    %v634 = vunpack.c.0.s8 %v633
    %v635 = vlaneseq
    %v636 = vshrl.u32 %v635, 7
    %v637 = vsub.s32 %v634, %v636
    %v638 = vrot.slane %v630, %v637
    %v640 = vunpack.c.l.s4 1966171168
    %v641 = vunpack.c.0.s8 %v640
    %v642 = vlaneseq
    %v643 = vshrl.u32 %v642, 7
    %v644 = vsub.s32 %v641, %v643
    %v645 = vrot.slane %v631, %v644
    %v646 = vcombine.low %v638, %v645
    %v648 = vunpack.c.l.s4 1966171168
    %v649 = vunpack.c.0.s8 %v648
    %v650 = vlaneseq
    %v651 = vshrl.u32 %v650, 7
    %v652 = vsub.s32 %v649, %v651
    %v653 = vrot.slane %v646, %v652
    %s655 = scalar_lea.vmem [#allocation7], 1
    %656 = vst.msk [vmem:[%s655] ss:$8 sm:$0xf] %vm619, %v653
    %657 = vst.msk [vmem:[%s655] ss:$8 sm:$0x0] %vm619, %v653
    %v658 = vsel %vm579, %v380, -1.0
    %v659 = vsel %vm580, %v386, -1.0
    %v660 = vsel %vm581, %v392, -1.0
    %v661 = vsel %vm582, %v398, -1.0
    %v666 = vcombine.low %v658, %v659
    %v667 = vcombine.low %v660, %v661
    %v669 = vunpack.c.l.s4 1966171168
    %v670 = vunpack.c.0.s8 %v669
    %v671 = vlaneseq
    %v672 = vshrl.u32 %v671, 7
    %v673 = vsub.s32 %v670, %v672
    %v674 = vrot.slane %v666, %v673
    %v676 = vunpack.c.l.s4 1966171168
    %v677 = vunpack.c.0.s8 %v676
    %v678 = vlaneseq
    %v679 = vshrl.u32 %v678, 7
    %v680 = vsub.s32 %v677, %v679
    %v681 = vrot.slane %v667, %v680
    %v682 = vcombine.low %v674, %v681
    %v684 = vunpack.c.l.s4 1966171168
    %v685 = vunpack.c.0.s8 %v684
    %v686 = vlaneseq
    %v687 = vshrl.u32 %v686, 7
    %v688 = vsub.s32 %v685, %v687
    %v689 = vrot.slane %v682, %v688
    %s691 = scalar_lea.vmem [#allocation7], 2
    %692 = vst.msk [vmem:[%s691] ss:$8 sm:$0xf] %vm619, %v689
    %693 = vst.msk [vmem:[%s691] ss:$8 sm:$0x0] %vm619, %v689
    %v694 = vsel %vm579, %v408, -1.0
    %v695 = vsel %vm580, %v414, -1.0
    %v696 = vsel %vm581, %v420, -1.0
    %v697 = vsel %vm582, %v426, -1.0
    %v702 = vcombine.low %v694, %v695
    %v703 = vcombine.low %v696, %v697
    %v705 = vunpack.c.l.s4 1966171168
    %v706 = vunpack.c.0.s8 %v705
    %v707 = vlaneseq
    %v708 = vshrl.u32 %v707, 7
    %v709 = vsub.s32 %v706, %v708
    %v710 = vrot.slane %v702, %v709
    %v712 = vunpack.c.l.s4 1966171168
    %v713 = vunpack.c.0.s8 %v712
    %v714 = vlaneseq
    %v715 = vshrl.u32 %v714, 7
    %v716 = vsub.s32 %v713, %v715
    %v717 = vrot.slane %v703, %v716
    %v718 = vcombine.low %v710, %v717
    %v720 = vunpack.c.l.s4 1966171168
    %v721 = vunpack.c.0.s8 %v720
    %v722 = vlaneseq
    %v723 = vshrl.u32 %v722, 7
    %v724 = vsub.s32 %v721, %v723
    %v725 = vrot.slane %v718, %v724
    %s727 = scalar_lea.vmem [#allocation7], 3
    %728 = vst.msk [vmem:[%s727] ss:$8 sm:$0xf] %vm619, %v725
    %729 = vst.msk [vmem:[%s727] ss:$8 sm:$0x0] %vm619, %v725
    %v730 = vsel %vm579, %v436, -1.0
    %v731 = vsel %vm580, %v442, -1.0
    %v732 = vsel %vm581, %v448, -1.0
    %v733 = vsel %vm582, %v454, -1.0
    %v738 = vcombine.low %v730, %v731
    %v739 = vcombine.low %v732, %v733
    %v741 = vunpack.c.l.s4 1966171168
    %v742 = vunpack.c.0.s8 %v741
    %v743 = vlaneseq
    %v744 = vshrl.u32 %v743, 7
    %v745 = vsub.s32 %v742, %v744
    %v746 = vrot.slane %v738, %v745
    %v748 = vunpack.c.l.s4 1966171168
    %v749 = vunpack.c.0.s8 %v748
    %v750 = vlaneseq
    %v751 = vshrl.u32 %v750, 7
    %v752 = vsub.s32 %v749, %v751
    %v753 = vrot.slane %v739, %v752
    %v754 = vcombine.low %v746, %v753
    %v756 = vunpack.c.l.s4 1966171168
    %v757 = vunpack.c.0.s8 %v756
    %v758 = vlaneseq
    %v759 = vshrl.u32 %v758, 7
    %v760 = vsub.s32 %v757, %v759
    %v761 = vrot.slane %v754, %v760
    %s763 = scalar_lea.vmem [#allocation7], 4
    %764 = vst.msk [vmem:[%s763] ss:$8 sm:$0xf] %vm619, %v761
    %765 = vst.msk [vmem:[%s763] ss:$8 sm:$0x0] %vm619, %v761
    %v766 = vsel %vm579, %v464, -1.0
    %v767 = vsel %vm580, %v470, -1.0
    %v768 = vsel %vm581, %v476, -1.0
    %v769 = vsel %vm582, %v482, -1.0
    %v774 = vcombine.low %v766, %v767
    %v775 = vcombine.low %v768, %v769
    %v777 = vunpack.c.l.s4 1966171168
    %v778 = vunpack.c.0.s8 %v777
    %v779 = vlaneseq
    %v780 = vshrl.u32 %v779, 7
    %v781 = vsub.s32 %v778, %v780
    %v782 = vrot.slane %v774, %v781
    %v784 = vunpack.c.l.s4 1966171168
    %v785 = vunpack.c.0.s8 %v784
    %v786 = vlaneseq
    %v787 = vshrl.u32 %v786, 7
    %v788 = vsub.s32 %v785, %v787
    %v789 = vrot.slane %v775, %v788
    %v790 = vcombine.low %v782, %v789
    %v792 = vunpack.c.l.s4 1966171168
    %v793 = vunpack.c.0.s8 %v792
    %v794 = vlaneseq
    %v795 = vshrl.u32 %v794, 7
    %v796 = vsub.s32 %v793, %v795
    %v797 = vrot.slane %v790, %v796
    %s799 = scalar_lea.vmem [#allocation7], 5
    %800 = vst.msk [vmem:[%s799] ss:$8 sm:$0xf] %vm619, %v797
    %801 = vst.msk [vmem:[%s799] ss:$8 sm:$0x0] %vm619, %v797
    %802 = vst [vmem:[#allocation7] sm:$0xc0] 0.0
    %803 = vst [vmem:[#allocation7 + $0x8] sm:$0xc0] 0.0
    %804 = vst [vmem:[#allocation7 + $0x10] sm:$0xc0] 0.0
    %805 = vst [vmem:[#allocation7 + $0x18] sm:$0xc0] 0.0
    %s806 = scalar_lea.vmem [#allocation5], 8
    %v807 = vld [vmem:[%s806] sm:$0xff]
    %809 = vset.pattern.permute.xlu0 0
    %810 = vperm.xlu0 %809, %v807
    %v811 = vpop.permute.xlu0 %810
    %v813 = vsub.f32 %v53, %v811
    %v814 = vsub.f32 %v57, %v811
    %v815 = vsub.f32 %v61, %v811
    %v816 = vsub.f32 %v65, %v811
    %817 = vset.pattern.permute.xlu0 1
    %818 = vperm.xlu0 %817, %v807
    %v819 = vpop.permute.xlu0 %818
    %v821 = vsub.f32 %v83, %v819
    %v822 = vsub.f32 %v87, %v819
    %v823 = vsub.f32 %v91, %v819
    %v824 = vsub.f32 %v95, %v819
    %825 = vset.pattern.permute.xlu0 2
    %826 = vperm.xlu0 %825, %v807
    %v827 = vpop.permute.xlu0 %826
    %v829 = vsub.f32 %v827, %v53
    %v830 = vsub.f32 %v827, %v57
    %v831 = vsub.f32 %v827, %v61
    %v832 = vsub.f32 %v827, %v65
    %833 = vset.pattern.permute.xlu0 3
    %834 = vperm.xlu0 %833, %v807
    %v835 = vpop.permute.xlu0 %834
    %v837 = vsub.f32 %v835, %v83
    %v838 = vsub.f32 %v835, %v87
    %v839 = vsub.f32 %v835, %v91
    %v840 = vsub.f32 %v835, %v95
    %v841 = vadd.f32 %v813, %v829
    %v842 = vadd.f32 %v814, %v830
    %v843 = vadd.f32 %v815, %v831
    %v844 = vadd.f32 %v816, %v832
    %v845 = vadd.f32 %v821, %v837
    %v846 = vadd.f32 %v822, %v838
    %v847 = vadd.f32 %v823, %v839
    %v848 = vadd.f32 %v824, %v840
    %v849 = vmul.f32 %v841, %v845
    %v850 = vmul.f32 %v842, %v846
    %v851 = vmul.f32 %v843, %v847
    %v852 = vmul.f32 %v844, %v848
    %v853 = vmin.f32 %v813, %v821
    %v854 = vmin.f32 %v814, %v822
    %v855 = vmin.f32 %v815, %v823
    %v856 = vmin.f32 %v816, %v824
    %v857 = vmin.f32 %v829, %v837
    %v858 = vmin.f32 %v830, %v838
    %v859 = vmin.f32 %v831, %v839
    %v860 = vmin.f32 %v832, %v840
    %v861 = vmin.f32 %v853, %v857
    %v862 = vmin.f32 %v854, %v858
    %v863 = vmin.f32 %v855, %v859
    %v864 = vmin.f32 %v856, %v860
    %v865 = vmax.f32 %v813, %v821
    %v866 = vmax.f32 %v814, %v822
    %v867 = vmax.f32 %v815, %v823
    %v868 = vmax.f32 %v816, %v824
    %v869 = vmax.f32 %v829, %v837
    %v870 = vmax.f32 %v830, %v838
    %v871 = vmax.f32 %v831, %v839
    %v872 = vmax.f32 %v832, %v840
    %v873 = vmax.f32 %v865, %v869
    %v874 = vmax.f32 %v866, %v870
    %v875 = vmax.f32 %v867, %v871
    %v876 = vmax.f32 %v868, %v872
    %877 = vrot.lane.b32.xlu0 %v807, 126
    %v878 = vpop.permute.xlu0 %877
    %v880 = vadd.f32 %v807, %v878
    %v881 = vmul.f32 %v880, 0.5
    %883 = vset.pattern.permute.xlu0 0
    %884 = vperm.xlu0 %883, %v881
    %v885 = vpop.permute.xlu0 %884
    %v887 = vsub.f32 %v53, %v885
    %v888 = vsub.f32 %v57, %v885
    %v889 = vsub.f32 %v61, %v885
    %v890 = vsub.f32 %v65, %v885
    %891 = vset.pattern.permute.xlu0 1
    %892 = vperm.xlu0 %891, %v881
    %v893 = vpop.permute.xlu0 %892
    %v895 = vsub.f32 %v83, %v893
    %v896 = vsub.f32 %v87, %v893
    %v897 = vsub.f32 %v91, %v893
    %v898 = vsub.f32 %v95, %v893
    %v899 = vmax.f32 %v887, %v895
    %v900 = vmax.f32 %v888, %v896
    %v901 = vmax.f32 %v889, %v897
    %v902 = vmax.f32 %v890, %v898
    %v903 = vsub.f32 %v885, %v53
    %v904 = vsub.f32 %v885, %v57
    %v905 = vsub.f32 %v885, %v61
    %v906 = vsub.f32 %v885, %v65
    %v907 = vsub.f32 %v893, %v83
    %v908 = vsub.f32 %v893, %v87
    %v909 = vsub.f32 %v893, %v91
    %v910 = vsub.f32 %v893, %v95
    %v911 = vmax.f32 %v903, %v907
    %v912 = vmax.f32 %v904, %v908
    %v913 = vmax.f32 %v905, %v909
    %v914 = vmax.f32 %v906, %v910
    %v915 = vmax.f32 %v899, %v911
    %v916 = vmax.f32 %v900, %v912
    %v917 = vmax.f32 %v901, %v913
    %v918 = vmax.f32 %v902, %v914
    %vm919 = vcmp.gt.f32.partialorder %v861, 0.0
    %vm920 = vcmp.gt.f32.partialorder %v862, 0.0
    %vm921 = vcmp.gt.f32.partialorder %v863, 0.0
    %vm922 = vcmp.gt.f32.partialorder %v864, 0.0
    %vm923 = vcmp.gt.f32.partialorder %v873, %v210
    %vm924 = vcmp.gt.f32.partialorder %v874, %v214
    %vm925 = vcmp.gt.f32.partialorder %v875, %v218
    %vm926 = vcmp.gt.f32.partialorder %v876, %v222
    %vm927 = vmand %vm919, %vm923
    %vm928 = vmand %vm920, %vm924
    %vm929 = vmand %vm921, %vm925
    %vm930 = vmand %vm922, %vm926
    %vm931 = vcmp.le.f32.partialorder %v873, %v239
    %vm932 = vcmp.le.f32.partialorder %v874, %v243
    %vm933 = vcmp.le.f32.partialorder %v875, %v247
    %vm934 = vcmp.le.f32.partialorder %v876, %v251
    %vm935 = vmand %vm927, %vm931
    %vm936 = vmand %vm928, %vm932
    %vm937 = vmand %vm929, %vm933
    %vm938 = vmand %vm930, %vm934
    %vm939 = vcmp.lt.f32.partialorder %v915, %v268
    %vm940 = vcmp.lt.f32.partialorder %v916, %v272
    %vm941 = vcmp.lt.f32.partialorder %v917, %v276
    %vm942 = vcmp.lt.f32.partialorder %v918, %v280
    %vm943 = vmand %vm935, %vm939
    %vm944 = vmand %vm936, %vm940
    %vm945 = vmand %vm937, %vm941
    %vm946 = vmand %vm938, %vm942
    %v947 = vsel %vm943, %v849, 1e+08
    %v948 = vsel %vm944, %v850, 1e+08
    %v949 = vsel %vm945, %v851, 1e+08
    %v950 = vsel %vm946, %v852, 1e+08
    %v951 = vrot.slane %v947, 4
    %v952 = vmin.f32 %v947, %v951
    %v953 = vrot.slane %v952, 2
    %v954 = vmin.f32 %v952, %v953
    %v955 = vrot.slane %v954, 1
    %v956 = vmin.f32 %v954, %v955
    %v957 = vrot.slane %v948, 4
    %v958 = vmin.f32 %v948, %v957
    %v959 = vrot.slane %v958, 2
    %v960 = vmin.f32 %v958, %v959
    %v961 = vrot.slane %v960, 1
    %v962 = vmin.f32 %v960, %v961
    %v963 = vrot.slane %v949, 4
    %v964 = vmin.f32 %v949, %v963
    %v965 = vrot.slane %v964, 2
    %v966 = vmin.f32 %v964, %v965
    %v967 = vrot.slane %v966, 1
    %v968 = vmin.f32 %v966, %v967
    %v969 = vrot.slane %v950, 4
    %v970 = vmin.f32 %v950, %v969
    %v971 = vrot.slane %v970, 2
    %v972 = vmin.f32 %v970, %v971
    %v973 = vrot.slane %v972, 1
    %v974 = vmin.f32 %v972, %v973
    %vm975 = vcmp.eq.f32.partialorder %v947, %v956
    %vm976 = vcmp.eq.f32.partialorder %v948, %v962
    %vm977 = vcmp.eq.f32.partialorder %v949, %v968
    %vm978 = vcmp.eq.f32.partialorder %v950, %v974
    %v979 = vsel %vm975, %v322, 8
    %v980 = vsel %vm976, %v322, 8
    %v981 = vsel %vm977, %v322, 8
    %v982 = vsel %vm978, %v322, 8
    %v983 = vrot.slane %v979, 4
    %vm984 = vcmp.lt.s32.totalorder %v979, %v983
    %v985 = vsel %vm984, %v979, %v983
    %v986 = vrot.slane %v985, 2
    %vm987 = vcmp.lt.s32.totalorder %v985, %v986
    %v988 = vsel %vm987, %v985, %v986
    %v989 = vrot.slane %v988, 1
    %vm990 = vcmp.lt.s32.totalorder %v988, %v989
    %v991 = vsel %vm990, %v988, %v989
    %v992 = vrot.slane %v980, 4
    %vm993 = vcmp.lt.s32.totalorder %v980, %v992
    %v994 = vsel %vm993, %v980, %v992
    %v995 = vrot.slane %v994, 2
    %vm996 = vcmp.lt.s32.totalorder %v994, %v995
    %v997 = vsel %vm996, %v994, %v995
    %v998 = vrot.slane %v997, 1
    %vm999 = vcmp.lt.s32.totalorder %v997, %v998
    %v1000 = vsel %vm999, %v997, %v998
    %v1001 = vrot.slane %v981, 4
    %vm1002 = vcmp.lt.s32.totalorder %v981, %v1001
    %v1003 = vsel %vm1002, %v981, %v1001
    %v1004 = vrot.slane %v1003, 2
    %vm1005 = vcmp.lt.s32.totalorder %v1003, %v1004
    %v1006 = vsel %vm1005, %v1003, %v1004
    %v1007 = vrot.slane %v1006, 1
    %vm1008 = vcmp.lt.s32.totalorder %v1006, %v1007
    %v1009 = vsel %vm1008, %v1006, %v1007
    %v1010 = vrot.slane %v982, 4
    %vm1011 = vcmp.lt.s32.totalorder %v982, %v1010
    %v1012 = vsel %vm1011, %v982, %v1010
    %v1013 = vrot.slane %v1012, 2
    %vm1014 = vcmp.lt.s32.totalorder %v1012, %v1013
    %v1015 = vsel %vm1014, %v1012, %v1013
    %v1016 = vrot.slane %v1015, 1
    %vm1017 = vcmp.lt.s32.totalorder %v1015, %v1016
    %v1018 = vsel %vm1017, %v1015, %v1016
    %vm1019 = vcmp.eq.s32.totalorder %v322, %v991
    %vm1020 = vcmp.eq.s32.totalorder %v322, %v1000
    %vm1021 = vcmp.eq.s32.totalorder %v322, %v1009
    %vm1022 = vcmp.eq.s32.totalorder %v322, %v1018
    %v1023 = vsel %vm1019, %v813, 0.0
    %v1024 = vsel %vm1020, %v814, 0.0
    %v1025 = vsel %vm1021, %v815, 0.0
    %v1026 = vsel %vm1022, %v816, 0.0
    %v1027 = vrot.slane %v1023, 4
    %v1028 = vadd.f32 %v1023, %v1027
    %v1029 = vrot.slane %v1028, 2
    %v1030 = vadd.f32 %v1028, %v1029
    %v1031 = vrot.slane %v1030, 1
    %v1032 = vadd.f32 %v1030, %v1031
    %v1033 = vrot.slane %v1024, 4
    %v1034 = vadd.f32 %v1024, %v1033
    %v1035 = vrot.slane %v1034, 2
    %v1036 = vadd.f32 %v1034, %v1035
    %v1037 = vrot.slane %v1036, 1
    %v1038 = vadd.f32 %v1036, %v1037
    %v1039 = vrot.slane %v1025, 4
    %v1040 = vadd.f32 %v1025, %v1039
    %v1041 = vrot.slane %v1040, 2
    %v1042 = vadd.f32 %v1040, %v1041
    %v1043 = vrot.slane %v1042, 1
    %v1044 = vadd.f32 %v1042, %v1043
    %v1045 = vrot.slane %v1026, 4
    %v1046 = vadd.f32 %v1026, %v1045
    %v1047 = vrot.slane %v1046, 2
    %v1048 = vadd.f32 %v1046, %v1047
    %v1049 = vrot.slane %v1048, 1
    %v1050 = vadd.f32 %v1048, %v1049
    %v1051 = vsel %vm1019, %v821, 0.0
    %v1052 = vsel %vm1020, %v822, 0.0
    %v1053 = vsel %vm1021, %v823, 0.0
    %v1054 = vsel %vm1022, %v824, 0.0
    %v1055 = vrot.slane %v1051, 4
    %v1056 = vadd.f32 %v1051, %v1055
    %v1057 = vrot.slane %v1056, 2
    %v1058 = vadd.f32 %v1056, %v1057
    %v1059 = vrot.slane %v1058, 1
    %v1060 = vadd.f32 %v1058, %v1059
    %v1061 = vrot.slane %v1052, 4
    %v1062 = vadd.f32 %v1052, %v1061
    %v1063 = vrot.slane %v1062, 2
    %v1064 = vadd.f32 %v1062, %v1063
    %v1065 = vrot.slane %v1064, 1
    %v1066 = vadd.f32 %v1064, %v1065
    %v1067 = vrot.slane %v1053, 4
    %v1068 = vadd.f32 %v1053, %v1067
    %v1069 = vrot.slane %v1068, 2
    %v1070 = vadd.f32 %v1068, %v1069
    %v1071 = vrot.slane %v1070, 1
    %v1072 = vadd.f32 %v1070, %v1071
    %v1073 = vrot.slane %v1054, 4
    %v1074 = vadd.f32 %v1054, %v1073
    %v1075 = vrot.slane %v1074, 2
    %v1076 = vadd.f32 %v1074, %v1075
    %v1077 = vrot.slane %v1076, 1
    %v1078 = vadd.f32 %v1076, %v1077
    %v1079 = vsel %vm1019, %v829, 0.0
    %v1080 = vsel %vm1020, %v830, 0.0
    %v1081 = vsel %vm1021, %v831, 0.0
    %v1082 = vsel %vm1022, %v832, 0.0
    %v1083 = vrot.slane %v1079, 4
    %v1084 = vadd.f32 %v1079, %v1083
    %v1085 = vrot.slane %v1084, 2
    %v1086 = vadd.f32 %v1084, %v1085
    %v1087 = vrot.slane %v1086, 1
    %v1088 = vadd.f32 %v1086, %v1087
    %v1089 = vrot.slane %v1080, 4
    %v1090 = vadd.f32 %v1080, %v1089
    %v1091 = vrot.slane %v1090, 2
    %v1092 = vadd.f32 %v1090, %v1091
    %v1093 = vrot.slane %v1092, 1
    %v1094 = vadd.f32 %v1092, %v1093
    %v1095 = vrot.slane %v1081, 4
    %v1096 = vadd.f32 %v1081, %v1095
    %v1097 = vrot.slane %v1096, 2
    %v1098 = vadd.f32 %v1096, %v1097
    %v1099 = vrot.slane %v1098, 1
    %v1100 = vadd.f32 %v1098, %v1099
    %v1101 = vrot.slane %v1082, 4
    %v1102 = vadd.f32 %v1082, %v1101
    %v1103 = vrot.slane %v1102, 2
    %v1104 = vadd.f32 %v1102, %v1103
    %v1105 = vrot.slane %v1104, 1
    %v1106 = vadd.f32 %v1104, %v1105
    %v1107 = vsel %vm1019, %v837, 0.0
    %v1108 = vsel %vm1020, %v838, 0.0
    %v1109 = vsel %vm1021, %v839, 0.0
    %v1110 = vsel %vm1022, %v840, 0.0
    %v1111 = vrot.slane %v1107, 4
    %v1112 = vadd.f32 %v1107, %v1111
    %v1113 = vrot.slane %v1112, 2
    %v1114 = vadd.f32 %v1112, %v1113
    %v1115 = vrot.slane %v1114, 1
    %v1116 = vadd.f32 %v1114, %v1115
    %v1117 = vrot.slane %v1108, 4
    %v1118 = vadd.f32 %v1108, %v1117
    %v1119 = vrot.slane %v1118, 2
    %v1120 = vadd.f32 %v1118, %v1119
    %v1121 = vrot.slane %v1120, 1
    %v1122 = vadd.f32 %v1120, %v1121
    %v1123 = vrot.slane %v1109, 4
    %v1124 = vadd.f32 %v1109, %v1123
    %v1125 = vrot.slane %v1124, 2
    %v1126 = vadd.f32 %v1124, %v1125
    %v1127 = vrot.slane %v1126, 1
    %v1128 = vadd.f32 %v1126, %v1127
    %v1129 = vrot.slane %v1110, 4
    %v1130 = vadd.f32 %v1110, %v1129
    %v1131 = vrot.slane %v1130, 2
    %v1132 = vadd.f32 %v1130, %v1131
    %v1133 = vrot.slane %v1132, 1
    %v1134 = vadd.f32 %v1132, %v1133
    %1135 = vset.pattern.permute.xlu0 4
    %1136 = vperm.xlu0 %1135, %v807
    %v1137 = vpop.permute.xlu0 %1136
    %v1139 = vsel %vm1019, %v1137, 0.0
    %v1140 = vsel %vm1020, %v1137, 0.0
    %v1141 = vsel %vm1021, %v1137, 0.0
    %v1142 = vsel %vm1022, %v1137, 0.0
    %v1143 = vrot.slane %v1139, 4
    %v1144 = vadd.f32 %v1139, %v1143
    %v1145 = vrot.slane %v1144, 2
    %v1146 = vadd.f32 %v1144, %v1145
    %v1147 = vrot.slane %v1146, 1
    %v1148 = vadd.f32 %v1146, %v1147
    %v1149 = vrot.slane %v1140, 4
    %v1150 = vadd.f32 %v1140, %v1149
    %v1151 = vrot.slane %v1150, 2
    %v1152 = vadd.f32 %v1150, %v1151
    %v1153 = vrot.slane %v1152, 1
    %v1154 = vadd.f32 %v1152, %v1153
    %v1155 = vrot.slane %v1141, 4
    %v1156 = vadd.f32 %v1141, %v1155
    %v1157 = vrot.slane %v1156, 2
    %v1158 = vadd.f32 %v1156, %v1157
    %v1159 = vrot.slane %v1158, 1
    %v1160 = vadd.f32 %v1158, %v1159
    %v1161 = vrot.slane %v1142, 4
    %v1162 = vadd.f32 %v1142, %v1161
    %v1163 = vrot.slane %v1162, 2
    %v1164 = vadd.f32 %v1162, %v1163
    %v1165 = vrot.slane %v1164, 1
    %v1166 = vadd.f32 %v1164, %v1165
    %v1167 = vmin.f32 %v1032, %v1088
    %v1168 = vmin.f32 %v1038, %v1094
    %v1169 = vmin.f32 %v1044, %v1100
    %v1170 = vmin.f32 %v1050, %v1106
    %v1171 = vmax.f32 %v1032, %v1088
    %v1172 = vmax.f32 %v1038, %v1094
    %v1173 = vmax.f32 %v1044, %v1100
    %v1174 = vmax.f32 %v1050, %v1106
    %v1175 = vmin.f32 %v1060, %v1116
    %v1176 = vmin.f32 %v1066, %v1122
    %v1177 = vmin.f32 %v1072, %v1128
    %v1178 = vmin.f32 %v1078, %v1134
    %v1179 = vmax.f32 %v1060, %v1116
    %v1180 = vmax.f32 %v1066, %v1122
    %v1181 = vmax.f32 %v1072, %v1128
    %v1182 = vmax.f32 %v1078, %v1134
    %v1183 = vmul.f32 %v1167, %v1175
    %v1184 = vmul.f32 %v1168, %v1176
    %v1185 = vmul.f32 %v1169, %v1177
    %v1186 = vmul.f32 %v1170, %v1178
    %v1187 = vmul.f32 %v1171, %v1179
    %v1188 = vmul.f32 %v1172, %v1180
    %v1189 = vmul.f32 %v1173, %v1181
    %v1190 = vmul.f32 %v1174, %v1182
    %v1191 = vadd.f32 %v1187, 1e-10
    %v1192 = vadd.f32 %v1188, 1e-10
    %v1193 = vadd.f32 %v1189, 1e-10
    %v1194 = vadd.f32 %v1190, 1e-10
    %v1195 = vrcp.pop %v1191
    %v1196 = vrcp.pop %v1192
    %v1197 = vrcp.pop %v1193
    %v1198 = vrcp.pop %v1194
    %v1199 = vmul.f32 %v1183, %v1195
    %v1200 = vmul.f32 %v1184, %v1196
    %v1201 = vmul.f32 %v1185, %v1197
    %v1202 = vmul.f32 %v1186, %v1198
    %v1203 = vrsqrt.pop %v1199
    %v1204 = vmul.f32 %v1199, %v1203
    %vm1205 = vcmp.eq.f32.partialorder %v1199, inf
    %v1206 = vsel %vm1205, %v1199, %v1204
    %vm1207 = vcmp.eq.f32.partialorder %v1199, 0.0
    %v1208 = vand.u32 %v1199, 2147483648
    %v1209 = vsel %vm1207, %v1208, %v1206
    %v1210 = vrsqrt.pop %v1200
    %v1211 = vmul.f32 %v1200, %v1210
    %vm1212 = vcmp.eq.f32.partialorder %v1200, inf
    %v1213 = vsel %vm1212, %v1200, %v1211
    %vm1214 = vcmp.eq.f32.partialorder %v1200, 0.0
    %v1215 = vand.u32 %v1200, 2147483648
    %v1216 = vsel %vm1214, %v1215, %v1213
    %v1217 = vrsqrt.pop %v1201
    %v1218 = vmul.f32 %v1201, %v1217
    %vm1219 = vcmp.eq.f32.partialorder %v1201, inf
    %v1220 = vsel %vm1219, %v1201, %v1218
    %vm1221 = vcmp.eq.f32.partialorder %v1201, 0.0
    %v1222 = vand.u32 %v1201, 2147483648
    %v1223 = vsel %vm1221, %v1222, %v1220
    %v1224 = vrsqrt.pop %v1202
    %v1225 = vmul.f32 %v1202, %v1224
    %vm1226 = vcmp.eq.f32.partialorder %v1202, inf
    %v1227 = vsel %vm1226, %v1202, %v1225
    %vm1228 = vcmp.eq.f32.partialorder %v1202, 0.0
    %v1229 = vand.u32 %v1202, 2147483648
    %v1230 = vsel %vm1228, %v1229, %v1227
    %vm1231 = vcmp.lt.f32.partialorder %v956, 1e+08
    %vm1232 = vcmp.lt.f32.partialorder %v962, 1e+08
    %vm1233 = vcmp.lt.f32.partialorder %v968, 1e+08
    %vm1234 = vcmp.lt.f32.partialorder %v974, 1e+08
    %v1235 = vsel %vm1231, %v1148, 0.0
    %v1236 = vsel %vm1232, %v1154, 0.0
    %v1237 = vsel %vm1233, %v1160, 0.0
    %v1238 = vsel %vm1234, %v1166, 0.0
    %v1243 = vcombine.low %v1235, %v1236
    %v1244 = vcombine.low %v1237, %v1238
    %v1246 = vunpack.c.l.s4 1966171168
    %v1247 = vunpack.c.0.s8 %v1246
    %v1248 = vlaneseq
    %v1249 = vshrl.u32 %v1248, 7
    %v1250 = vsub.s32 %v1247, %v1249
    %v1251 = vrot.slane %v1243, %v1250
    %v1253 = vunpack.c.l.s4 1966171168
    %v1254 = vunpack.c.0.s8 %v1253
    %v1255 = vlaneseq
    %v1256 = vshrl.u32 %v1255, 7
    %v1257 = vsub.s32 %v1254, %v1256
    %v1258 = vrot.slane %v1244, %v1257
    %v1259 = vcombine.low %v1251, %v1258
    %v1261 = vunpack.c.l.s4 1966171168
    %v1262 = vunpack.c.0.s8 %v1261
    %v1263 = vlaneseq
    %v1264 = vshrl.u32 %v1263, 7
    %v1265 = vsub.s32 %v1262, %v1264
    %v1266 = vrot.slane %v1259, %v1265
    %s1268 = scalar_lea.vmem [#allocation7], 32
    %1269 = vst.msk [vmem:[%s1268] ss:$8 sm:$0xf] %vm619, %v1266
    %1270 = vst.msk [vmem:[%s1268] ss:$8 sm:$0x0] %vm619, %v1266
    %v1271 = vsel %vm1231, %v1209, -1.0
    %v1272 = vsel %vm1232, %v1216, -1.0
    %v1273 = vsel %vm1233, %v1223, -1.0
    %v1274 = vsel %vm1234, %v1230, -1.0
    %v1279 = vcombine.low %v1271, %v1272
    %v1280 = vcombine.low %v1273, %v1274
    %v1282 = vunpack.c.l.s4 1966171168
    %v1283 = vunpack.c.0.s8 %v1282
    %v1284 = vlaneseq
    %v1285 = vshrl.u32 %v1284, 7
    %v1286 = vsub.s32 %v1283, %v1285
    %v1287 = vrot.slane %v1279, %v1286
    %v1289 = vunpack.c.l.s4 1966171168
    %v1290 = vunpack.c.0.s8 %v1289
    %v1291 = vlaneseq
    %v1292 = vshrl.u32 %v1291, 7
    %v1293 = vsub.s32 %v1290, %v1292
    %v1294 = vrot.slane %v1280, %v1293
    %v1295 = vcombine.low %v1287, %v1294
    %v1297 = vunpack.c.l.s4 1966171168
    %v1298 = vunpack.c.0.s8 %v1297
    %v1299 = vlaneseq
    %v1300 = vshrl.u32 %v1299, 7
    %v1301 = vsub.s32 %v1298, %v1300
    %v1302 = vrot.slane %v1295, %v1301
    %s1304 = scalar_lea.vmem %s1268, 1 [#allocation7]
    %1305 = vst.msk [vmem:[%s1304] ss:$8 sm:$0xf] %vm619, %v1302
    %1306 = vst.msk [vmem:[%s1304] ss:$8 sm:$0x0] %vm619, %v1302
    %v1307 = vsel %vm1231, %v1032, -1.0
    %v1308 = vsel %vm1232, %v1038, -1.0
    %v1309 = vsel %vm1233, %v1044, -1.0
    %v1310 = vsel %vm1234, %v1050, -1.0
    %v1315 = vcombine.low %v1307, %v1308
    %v1316 = vcombine.low %v1309, %v1310
    %v1318 = vunpack.c.l.s4 1966171168
    %v1319 = vunpack.c.0.s8 %v1318
    %v1320 = vlaneseq
    %v1321 = vshrl.u32 %v1320, 7
    %v1322 = vsub.s32 %v1319, %v1321
    %v1323 = vrot.slane %v1315, %v1322
    %v1325 = vunpack.c.l.s4 1966171168
    %v1326 = vunpack.c.0.s8 %v1325
    %v1327 = vlaneseq
    %v1328 = vshrl.u32 %v1327, 7
    %v1329 = vsub.s32 %v1326, %v1328
    %v1330 = vrot.slane %v1316, %v1329
    %v1331 = vcombine.low %v1323, %v1330
    %v1333 = vunpack.c.l.s4 1966171168
    %v1334 = vunpack.c.0.s8 %v1333
    %v1335 = vlaneseq
    %v1336 = vshrl.u32 %v1335, 7
    %v1337 = vsub.s32 %v1334, %v1336
    %v1338 = vrot.slane %v1331, %v1337
    %s1340 = scalar_lea.vmem %s1268, 2 [#allocation7]
    %1341 = vst.msk [vmem:[%s1340] ss:$8 sm:$0xf] %vm619, %v1338
    %1342 = vst.msk [vmem:[%s1340] ss:$8 sm:$0x0] %vm619, %v1338
    %v1343 = vsel %vm1231, %v1060, -1.0
    %v1344 = vsel %vm1232, %v1066, -1.0
    %v1345 = vsel %vm1233, %v1072, -1.0
    %v1346 = vsel %vm1234, %v1078, -1.0
    %v1351 = vcombine.low %v1343, %v1344
    %v1352 = vcombine.low %v1345, %v1346
    %v1354 = vunpack.c.l.s4 1966171168
    %v1355 = vunpack.c.0.s8 %v1354
    %v1356 = vlaneseq
    %v1357 = vshrl.u32 %v1356, 7
    %v1358 = vsub.s32 %v1355, %v1357
    %v1359 = vrot.slane %v1351, %v1358
    %v1361 = vunpack.c.l.s4 1966171168
    %v1362 = vunpack.c.0.s8 %v1361
    %v1363 = vlaneseq
    %v1364 = vshrl.u32 %v1363, 7
    %v1365 = vsub.s32 %v1362, %v1364
    %v1366 = vrot.slane %v1352, %v1365
    %v1367 = vcombine.low %v1359, %v1366
    %v1369 = vunpack.c.l.s4 1966171168
    %v1370 = vunpack.c.0.s8 %v1369
    %v1371 = vlaneseq
    %v1372 = vshrl.u32 %v1371, 7
    %v1373 = vsub.s32 %v1370, %v1372
    %v1374 = vrot.slane %v1367, %v1373
    %s1376 = scalar_lea.vmem %s1268, 3 [#allocation7]
    %1377 = vst.msk [vmem:[%s1376] ss:$8 sm:$0xf] %vm619, %v1374
    %1378 = vst.msk [vmem:[%s1376] ss:$8 sm:$0x0] %vm619, %v1374
    %v1379 = vsel %vm1231, %v1088, -1.0
    %v1380 = vsel %vm1232, %v1094, -1.0
    %v1381 = vsel %vm1233, %v1100, -1.0
    %v1382 = vsel %vm1234, %v1106, -1.0
    %v1387 = vcombine.low %v1379, %v1380
    %v1388 = vcombine.low %v1381, %v1382
    %v1390 = vunpack.c.l.s4 1966171168
    %v1391 = vunpack.c.0.s8 %v1390
    %v1392 = vlaneseq
    %v1393 = vshrl.u32 %v1392, 7
    %v1394 = vsub.s32 %v1391, %v1393
    %v1395 = vrot.slane %v1387, %v1394
    %v1397 = vunpack.c.l.s4 1966171168
    %v1398 = vunpack.c.0.s8 %v1397
    %v1399 = vlaneseq
    %v1400 = vshrl.u32 %v1399, 7
    %v1401 = vsub.s32 %v1398, %v1400
    %v1402 = vrot.slane %v1388, %v1401
    %v1403 = vcombine.low %v1395, %v1402
    %v1405 = vunpack.c.l.s4 1966171168
    %v1406 = vunpack.c.0.s8 %v1405
    %v1407 = vlaneseq
    %v1408 = vshrl.u32 %v1407, 7
    %v1409 = vsub.s32 %v1406, %v1408
    %v1410 = vrot.slane %v1403, %v1409
    %s1412 = scalar_lea.vmem %s1268, 4 [#allocation7]
    %1413 = vst.msk [vmem:[%s1412] ss:$8 sm:$0xf] %vm619, %v1410
    %1414 = vst.msk [vmem:[%s1412] ss:$8 sm:$0x0] %vm619, %v1410
    %v1415 = vsel %vm1231, %v1116, -1.0
    %v1416 = vsel %vm1232, %v1122, -1.0
    %v1417 = vsel %vm1233, %v1128, -1.0
    %v1418 = vsel %vm1234, %v1134, -1.0
    %v1423 = vcombine.low %v1415, %v1416
    %v1424 = vcombine.low %v1417, %v1418
    %v1426 = vunpack.c.l.s4 1966171168
    %v1427 = vunpack.c.0.s8 %v1426
    %v1428 = vlaneseq
    %v1429 = vshrl.u32 %v1428, 7
    %v1430 = vsub.s32 %v1427, %v1429
    %v1431 = vrot.slane %v1423, %v1430
    %v1433 = vunpack.c.l.s4 1966171168
    %v1434 = vunpack.c.0.s8 %v1433
    %v1435 = vlaneseq
    %v1436 = vshrl.u32 %v1435, 7
    %v1437 = vsub.s32 %v1434, %v1436
    %v1438 = vrot.slane %v1424, %v1437
    %v1439 = vcombine.low %v1431, %v1438
    %v1441 = vunpack.c.l.s4 1966171168
    %v1442 = vunpack.c.0.s8 %v1441
    %v1443 = vlaneseq
    %v1444 = vshrl.u32 %v1443, 7
    %v1445 = vsub.s32 %v1442, %v1444
    %v1446 = vrot.slane %v1439, %v1445
    %s1448 = scalar_lea.vmem %s1268, 5 [#allocation7]
    %1449 = vst.msk [vmem:[%s1448] ss:$8 sm:$0xf] %vm619, %v1446
    %1450 = vst.msk [vmem:[%s1448] ss:$8 sm:$0x0] %vm619, %v1446
    %1451 = vst [vmem:[%s1268] sm:$0xc0] 0.0
    %1452 = vst [vmem:[%s1268 + $0x8] sm:$0xc0] 0.0
    %1453 = vst [vmem:[%s1268 + $0x10] sm:$0xc0] 0.0
    %1454 = vst [vmem:[%s1268 + $0x18] sm:$0xc0] 0.0
    // Predicated region
    $region18: #{tpu_custom_call.1} parent=1 // pred_check
      _
    $region19: #{tpu_custom_call.1} parent=1 // pred_check_branch
      %1456 = sbr.rel (0) target = $region21
    $region20: #{tpu_custom_call.1} parent=1 // pred_region
      %s1458 = ssub.s32 1024, 1024
      %1459 = vsyncadd [#allocation4], %s1458
      %s1460 = sshll.u32 [#allocation7], 4
      %s1461 = int_to_ptr.vmem [resolvable:$true] %s1460
      %1466 = dma.vmem_to_hbm [thread:$0]  %s1461, 1024, %s2, [#allocation4], 512, 512, 32
    $region21: #{tpu_custom_call.1} parent=1 // pred_fallthru
      _
    // Predicated region
    $region22: #{tpu_custom_call.1} parent=1 // pred_check
      _
    $region23: #{tpu_custom_call.1} parent=1 // pred_check_branch
      %1468 = sbr.rel (0) target = $region25
    $region24: #{tpu_custom_call.1} parent=1 // pred_region
      %1469 = dma.done [#allocation4], 1024
    $region25: #{tpu_custom_call.1} parent=1 // pred_fallthru
      _
    %1470 = vsyncpa [#allocation3], 1
    %1471 = vsyncpa [#allocation6], 1
    %1472 = vsyncpa [#allocation4], 1

</llo_original>
